<compile_context>
chip_gen: v5e
topology: v5e:2x2
jax: 0.10.0
libtpu: 0.0.40
codegen_flags: <defaults>
</compile_context>

<pallas_src>
import jax
import jax.numpy as jnp
from jax.experimental import pallas as pl
from jax.experimental.pallas import tpu as pltpu


# ----------------------------------------------------------------------------
# LSTM cell update (PyTorch gate order i, f, g, o).
#   gates:  (1, 4H)  pre-activation
#   g_mask: (1, 4H)  lane mask selecting the g band (hoisted, built once)
# Only 2 EUP pushes here (sigmoid + tanh on the full vreg) plus tanh(c_new).
# ----------------------------------------------------------------------------
def _lstm_cell(gates, c_prev, g_mask, h_size):
    act = jnp.where(g_mask, jnp.tanh(gates), jax.nn.sigmoid(gates))
    i_g = act[:, 0 * h_size:1 * h_size]
    f_g = act[:, 1 * h_size:2 * h_size]
    g_g = act[:, 2 * h_size:3 * h_size]
    o_g = act[:, 3 * h_size:4 * h_size]
    c_new = f_g * c_prev + i_g * g_g
    h_new = o_g * jnp.tanh(c_new)
    return h_new, c_new


def _gate_mask(h_size):
    lane = jax.lax.broadcasted_iota(jnp.int32, (1, 4 * h_size), 1)
    return (lane >= 2 * h_size) & (lane < 3 * h_size)


# ----------------------------------------------------------------------------
# Fused input-projection + encoder + decoder kernel (single invocation, no grid).
# ----------------------------------------------------------------------------
def _autoencoder_kernel(x_ref, wih_e_ref, whh_e_ref, b_e_ref,
                        wih_d_ref, whh_d_ref, b_d_ref, out_ref):
    T, F = x_ref.shape
    H = whh_e_ref.shape[0]

    x = x_ref[...]                      # (T, F)
    wih_e = wih_e_ref[...]              # (F, 4H)
    whh_e = whh_e_ref[...]              # (H, 4H)
    b_e = b_e_ref[...]                  # (1, 4H)
    wih_d = wih_d_ref[...]              # (H, 4F)
    whh_d = whh_d_ref[...]              # (F, 4F)
    b_d = b_d_ref[...]                  # (1, 4F)

    # Batched (non-recurrent) input projections: one MXU matmul each, hoisted
    # off the serial chain but kept inside the kernel (no HBM round-trip).
    enc_xp = jnp.dot(x, wih_e, preferred_element_type=jnp.float32) + b_e   # (T, 4H)
    dec_xp = jnp.dot(x, wih_d, preferred_element_type=jnp.float32) + b_d   # (T, 4F); row 0 unused

    # Lane masks for the g band, hoisted out of the unrolled loops.
    g_mask_e = _gate_mask(H)
    g_mask_d = _gate_mask(F)

    # -------- encoder: only the final hidden state is needed ---------------
    h = jnp.zeros((1, H), jnp.float32)
    c = jnp.zeros((1, H), jnp.float32)
    for t in range(T):                  # fully unrolled; static slices
        gates = enc_xp[t:t + 1, :]
        if t > 0:                       # h == 0 at t == 0 -> skip dead matmul
            gates = gates + jnp.dot(h, whh_e,
                                    preferred_element_type=jnp.float32)
        h, c = _lstm_cell(gates, c, g_mask_e, H)

    # -------- decoder -------------------------------------------------------
    # Step 0 input is the encoder's final hidden state; steps 1..T-1 inputs are
    # flip(x[1:]), i.e. decoder input at step t is x[T - t] -> dec_xp row T - t.
    # Output row T-1-t (final torch.flip folded into the store index).
    hd = jnp.zeros((1, F), jnp.float32)
    cd = jnp.zeros((1, F), jnp.float32)
    for t in range(T):
        if t == 0:                      # hd == 0 -> recurrent term vanishes
            gates = jnp.dot(h, wih_d,
                            preferred_element_type=jnp.float32) + b_d
        else:
            gates = dec_xp[T - t:T - t + 1, :] + jnp.dot(
                hd, whh_d, preferred_element_type=jnp.float32)
        hd, cd = _lstm_cell(gates, cd, g_mask_d, F)
        out_ref[T - 1 - t:T - t, :] = hd        # direct per-step store


# ----------------------------------------------------------------------------
# One-time parameter preparation (transposes + bias sums kept out of the
# per-call jitted forward).
# ----------------------------------------------------------------------------
def prepare_params(params):
    w_ih_e, w_hh_e, b_ih_e, b_hh_e = params["enc"]
    w_ih_d, w_hh_d, b_ih_d, b_hh_d = params["dec"]
    H = w_hh_e.shape[1]
    F = w_hh_d.shape[1]
    return {
        "wih_e": jnp.asarray(w_ih_e, jnp.float32).T,                      # (Din, 4H)
        "whh_e": jnp.asarray(w_hh_e, jnp.float32).T,                      # (H, 4H)
        "b_e":   (b_ih_e + b_hh_e).astype(jnp.float32).reshape(1, 4 * H),
        "wih_d": jnp.asarray(w_ih_d, jnp.float32).T,                      # (H, 4F)
        "whh_d": jnp.asarray(w_hh_d, jnp.float32).T,                      # (F, 4F)
        "b_d":   (b_ih_d + b_hh_d).astype(jnp.float32).reshape(1, 4 * F),
    }


# ----------------------------------------------------------------------------
# Model forward (mirrors LSTMAutoencoderSrivastava.forward, batch_first=False).
# ----------------------------------------------------------------------------
def autoencoder_forward(x, prepped):
    """x: (T, 1, F) with F == hidden_size.  Returns x_hat: (T, 1, F)."""
    T, B, F = x.shape
    H = prepped["whh_e"].shape[0]
    assert B == 1 and F == H, \
        "module forward requires batch == 1 and n_features == hidden_size"

    x2d = x.reshape(T, F).astype(jnp.float32)

    vmem = pl.BlockSpec(memory_space=pltpu.MemorySpace.VMEM)
    x_hat2d = pl.pallas_call(
        _autoencoder_kernel,
        out_shape=jax.ShapeDtypeStruct((T, F), jnp.float32),
        in_specs=[vmem] * 7,
        out_specs=vmem,
    )(x2d, prepped["wih_e"], prepped["whh_e"], prepped["b_e"],
      prepped["wih_d"], prepped["whh_d"], prepped["b_d"])

    return x_hat2d.reshape(T, 1, F)


# ----------------------------------------------------------------------------
# Pure-JAX reference (lax.scan LSTM) for correctness checking.
# ----------------------------------------------------------------------------
def lstm_ref(x_seq, w_ih, w_hh, b_ih, b_hh):
    H = w_hh.shape[1]

    def step(carry, x_t):
        h, c = carry
        gates = x_t @ w_ih.T + h @ w_hh.T + b_ih + b_hh
        i = jax.nn.sigmoid(gates[0 * H:1 * H])
        f = jax.nn.sigmoid(gates[1 * H:2 * H])
        g = jnp.tanh(gates[2 * H:3 * H])
        o = jax.nn.sigmoid(gates[3 * H:4 * H])
        c = f * c + i * g
        h = o * jnp.tanh(c)
        return (h, c), h

    init = (jnp.zeros((H,), jnp.float32), jnp.zeros((H,), jnp.float32))
    _, hs = jax.lax.scan(step, init, x_seq)
    return hs


def autoencoder_ref(x, params):
    T, B, F = x.shape
    enc_h = lstm_ref(x.reshape(T, F), *params["enc"])
    h = enc_h[-1].reshape(1, 1, -1)
    dec_in = jnp.concatenate([h, jnp.flip(x[1:], axis=0)], axis=0)
    dec_h = lstm_ref(dec_in.reshape(T, -1), *params["dec"])
    return jnp.flip(dec_h.reshape(T, 1, -1), axis=0)


# ----------------------------------------------------------------------------
# Deterministic parameter init (PyTorch LSTM: uniform(-1/sqrt(H), 1/sqrt(H))).
# ----------------------------------------------------------------------------
def make_lstm_params(key, input_size, hidden_size):
    k = 1.0 / jnp.sqrt(jnp.float32(hidden_size))
    ks = jax.random.split(key, 4)
    w_ih = jax.random.uniform(ks[0], (4 * hidden_size, input_size),
                              jnp.float32, -k, k)
    w_hh = jax.random.uniform(ks[1], (4 * hidden_size, hidden_size),
                              jnp.float32, -k, k)
    b_ih = jax.random.uniform(ks[2], (4 * hidden_size,), jnp.float32, -k, k)
    b_hh = jax.random.uniform(ks[3], (4 * hidden_size,), jnp.float32, -k, k)
    return (w_ih, w_hh, b_ih, b_hh)


if __name__ == "__main__":
    # n_features must equal hidden_size (and batch == 1) for the module's
    # forward to be shape-consistent.
    n_features = 32
    hidden_size = 32
    seq_len = 8
    batch = 1

    key = jax.random.PRNGKey(0)
    k_x, k_enc, k_dec = jax.random.split(key, 3)

    # x is (time, batch, features) — batch_first=False
    x = jax.random.normal(k_x, (seq_len, batch, n_features), jnp.float32)

    params = {
        "enc": make_lstm_params(k_enc, n_features, hidden_size),
        "dec": make_lstm_params(k_dec, hidden_size, n_features),
    }
    prepped = prepare_params(params)   # one-time transposes / bias sums

    fwd = jax.jit(autoencoder_forward)
    x_hat = jax.block_until_ready(fwd(x, prepped))
    x_hat_ref = jax.block_until_ready(autoencoder_ref(x, params))

    assert x_hat.shape == (seq_len, batch, n_features)
    assert jnp.allclose(x_hat, x_hat_ref, atol=2e-5, rtol=2e-5)

    print("KERNEL_OK")
</pallas_src>

<mosaic_0001>
module attributes {stable_mosaic.version = 11 : i64} {
  func.func @_autoencoder_kernel(%arg0: memref<8x32xf32, #tpu.memory_space<vmem>>, %arg1: memref<32x128xf32, #tpu.memory_space<vmem>>, %arg2: memref<32x128xf32, #tpu.memory_space<vmem>>, %arg3: memref<1x128xf32, #tpu.memory_space<vmem>>, %arg4: memref<32x128xf32, #tpu.memory_space<vmem>>, %arg5: memref<32x128xf32, #tpu.memory_space<vmem>>, %arg6: memref<1x128xf32, #tpu.memory_space<vmem>>, %arg7: memref<8x32xf32, #tpu.memory_space<vmem>>) attributes {dimension_semantics = [], scalar_prefetch = 0 : i64, scratch_operands = 0 : i64, tpu.core_type = #tpu.core_type<tc>} {
    %c0 = arith.constant 0 : index
    %c0_0 = arith.constant 0 : index
    %0 = vector.load %arg0[%c0, %c0_0] : memref<8x32xf32, #tpu.memory_space<vmem>>, vector<8x32xf32>
    %c0_1 = arith.constant 0 : index
    %c0_2 = arith.constant 0 : index
    %1 = vector.load %arg1[%c0_1, %c0_2] : memref<32x128xf32, #tpu.memory_space<vmem>>, vector<32x128xf32>
    %c0_3 = arith.constant 0 : index
    %c0_4 = arith.constant 0 : index
    %2 = vector.load %arg2[%c0_3, %c0_4] : memref<32x128xf32, #tpu.memory_space<vmem>>, vector<32x128xf32>
    %c0_5 = arith.constant 0 : index
    %c0_6 = arith.constant 0 : index
    %3 = vector.load %arg3[%c0_5, %c0_6] : memref<1x128xf32, #tpu.memory_space<vmem>>, vector<1x128xf32>
    %c0_7 = arith.constant 0 : index
    %c0_8 = arith.constant 0 : index
    %4 = vector.load %arg4[%c0_7, %c0_8] : memref<32x128xf32, #tpu.memory_space<vmem>>, vector<32x128xf32>
    %c0_9 = arith.constant 0 : index
    %c0_10 = arith.constant 0 : index
    %5 = vector.load %arg5[%c0_9, %c0_10] : memref<32x128xf32, #tpu.memory_space<vmem>>, vector<32x128xf32>
    %c0_11 = arith.constant 0 : index
    %c0_12 = arith.constant 0 : index
    %6 = vector.load %arg6[%c0_11, %c0_12] : memref<1x128xf32, #tpu.memory_space<vmem>>, vector<1x128xf32>
    %cst = arith.constant dense<0.000000e+00> : vector<8x128xf32>
    %7 = tpu.matmul %0, %1, %cst {dimension_numbers = #tpu.dot_dimension_numbers<[1], [0], [0], [1], [0, 0, 1, 1], [], []>} : vector<8x32xf32>, vector<32x128xf32>, vector<8x128xf32> -> vector<8x128xf32>
    %8 = vector.broadcast %3 : vector<1x128xf32> to vector<8x128xf32>
    %9 = arith.addf %7, %8 : vector<8x128xf32>
    %cst_13 = arith.constant dense<0.000000e+00> : vector<8x128xf32>
    %10 = tpu.matmul %0, %4, %cst_13 {dimension_numbers = #tpu.dot_dimension_numbers<[1], [0], [0], [1], [0, 0, 1, 1], [], []>} : vector<8x32xf32>, vector<32x128xf32>, vector<8x128xf32> -> vector<8x128xf32>
    %11 = vector.broadcast %6 : vector<1x128xf32> to vector<8x128xf32>
    %12 = arith.addf %10, %11 : vector<8x128xf32>
    %13 = tpu.iota {dimensions = array<i32: 1>} : vector<1x128xi32>
    %c64_i32 = arith.constant 64 : i32
    %14 = vector.broadcast %c64_i32 : i32 to vector<1x128xi32>
    %15 = arith.cmpi sge, %13, %14 : vector<1x128xi32>
    %c96_i32 = arith.constant 96 : i32
    %16 = vector.broadcast %c96_i32 : i32 to vector<1x128xi32>
    %17 = arith.cmpi slt, %13, %16 : vector<1x128xi32>
    %18 = arith.andi %15, %17 : vector<1x128xi1>
    %19 = tpu.iota {dimensions = array<i32: 1>} : vector<1x128xi32>
    %c64_i32_14 = arith.constant 64 : i32
    %20 = vector.broadcast %c64_i32_14 : i32 to vector<1x128xi32>
    %21 = arith.cmpi sge, %19, %20 : vector<1x128xi32>
    %c96_i32_15 = arith.constant 96 : i32
    %22 = vector.broadcast %c96_i32_15 : i32 to vector<1x128xi32>
    %23 = arith.cmpi slt, %19, %22 : vector<1x128xi32>
    %24 = arith.andi %21, %23 : vector<1x128xi1>
    %cst_16 = arith.constant 0.000000e+00 : f32
    %25 = vector.broadcast %cst_16 : f32 to vector<1x32xf32>
    %26 = vector.extract_strided_slice %9 {offsets = [0, 0], sizes = [1, 128], strides = [1, 1]} : vector<8x128xf32> to vector<1x128xf32>
    %27 = math.tanh %26 : vector<1x128xf32>
    %28 = arith.negf %26 : vector<1x128xf32>
    %29 = math.exp %28 : vector<1x128xf32>
    %cst_17 = arith.constant 1.000000e+00 : f32
    %30 = vector.broadcast %cst_17 : f32 to vector<1x128xf32>
    %31 = arith.addf %30, %29 : vector<1x128xf32>
    %32 = arith.divf %30, %31 : vector<1x128xf32>
    %33 = arith.select %18, %27, %32 : vector<1x128xi1>, vector<1x128xf32>
    %34 = vector.extract_strided_slice %33 {offsets = [0, 0], sizes = [1, 32], strides = [1, 1]} : vector<1x128xf32> to vector<1x32xf32>
    %35 = vector.extract_strided_slice %33 {offsets = [0, 32], sizes = [1, 32], strides = [1, 1]} : vector<1x128xf32> to vector<1x32xf32>
    %36 = vector.extract_strided_slice %33 {offsets = [0, 64], sizes = [1, 32], strides = [1, 1]} : vector<1x128xf32> to vector<1x32xf32>
    %37 = vector.extract_strided_slice %33 {offsets = [0, 96], sizes = [1, 32], strides = [1, 1]} : vector<1x128xf32> to vector<1x32xf32>
    %38 = arith.mulf %35, %25 : vector<1x32xf32>
    %39 = arith.mulf %34, %36 : vector<1x32xf32>
    %40 = arith.addf %38, %39 : vector<1x32xf32>
    %41 = math.tanh %40 : vector<1x32xf32>
    %42 = arith.mulf %37, %41 : vector<1x32xf32>
    %43 = vector.extract_strided_slice %9 {offsets = [1, 0], sizes = [1, 128], strides = [1, 1]} : vector<8x128xf32> to vector<1x128xf32>
    %cst_18 = arith.constant dense<0.000000e+00> : vector<1x128xf32>
    %44 = tpu.matmul %42, %2, %cst_18 {dimension_numbers = #tpu.dot_dimension_numbers<[1], [0], [0], [1], [0, 0, 1, 1], [], []>} : vector<1x32xf32>, vector<32x128xf32>, vector<1x128xf32> -> vector<1x128xf32>
    %45 = arith.addf %43, %44 : vector<1x128xf32>
    %46 = math.tanh %45 : vector<1x128xf32>
    %47 = arith.negf %45 : vector<1x128xf32>
    %48 = math.exp %47 : vector<1x128xf32>
    %cst_19 = arith.constant 1.000000e+00 : f32
    %49 = vector.broadcast %cst_19 : f32 to vector<1x128xf32>
    %50 = arith.addf %49, %48 : vector<1x128xf32>
    %51 = arith.divf %49, %50 : vector<1x128xf32>
    %52 = arith.select %18, %46, %51 : vector<1x128xi1>, vector<1x128xf32>
    %53 = vector.extract_strided_slice %52 {offsets = [0, 0], sizes = [1, 32], strides = [1, 1]} : vector<1x128xf32> to vector<1x32xf32>
    %54 = vector.extract_strided_slice %52 {offsets = [0, 32], sizes = [1, 32], strides = [1, 1]} : vector<1x128xf32> to vector<1x32xf32>
    %55 = vector.extract_strided_slice %52 {offsets = [0, 64], sizes = [1, 32], strides = [1, 1]} : vector<1x128xf32> to vector<1x32xf32>
    %56 = vector.extract_strided_slice %52 {offsets = [0, 96], sizes = [1, 32], strides = [1, 1]} : vector<1x128xf32> to vector<1x32xf32>
    %57 = arith.mulf %54, %40 : vector<1x32xf32>
    %58 = arith.mulf %53, %55 : vector<1x32xf32>
    %59 = arith.addf %57, %58 : vector<1x32xf32>
    %60 = math.tanh %59 : vector<1x32xf32>
    %61 = arith.mulf %56, %60 : vector<1x32xf32>
    %62 = vector.extract_strided_slice %9 {offsets = [2, 0], sizes = [1, 128], strides = [1, 1]} : vector<8x128xf32> to vector<1x128xf32>
    %cst_20 = arith.constant dense<0.000000e+00> : vector<1x128xf32>
    %63 = tpu.matmul %61, %2, %cst_20 {dimension_numbers = #tpu.dot_dimension_numbers<[1], [0], [0], [1], [0, 0, 1, 1], [], []>} : vector<1x32xf32>, vector<32x128xf32>, vector<1x128xf32> -> vector<1x128xf32>
    %64 = arith.addf %62, %63 : vector<1x128xf32>
    %65 = math.tanh %64 : vector<1x128xf32>
    %66 = arith.negf %64 : vector<1x128xf32>
    %67 = math.exp %66 : vector<1x128xf32>
    %cst_21 = arith.constant 1.000000e+00 : f32
    %68 = vector.broadcast %cst_21 : f32 to vector<1x128xf32>
    %69 = arith.addf %68, %67 : vector<1x128xf32>
    %70 = arith.divf %68, %69 : vector<1x128xf32>
    %71 = arith.select %18, %65, %70 : vector<1x128xi1>, vector<1x128xf32>
    %72 = vector.extract_strided_slice %71 {offsets = [0, 0], sizes = [1, 32], strides = [1, 1]} : vector<1x128xf32> to vector<1x32xf32>
    %73 = vector.extract_strided_slice %71 {offsets = [0, 32], sizes = [1, 32], strides = [1, 1]} : vector<1x128xf32> to vector<1x32xf32>
    %74 = vector.extract_strided_slice %71 {offsets = [0, 64], sizes = [1, 32], strides = [1, 1]} : vector<1x128xf32> to vector<1x32xf32>
    %75 = vector.extract_strided_slice %71 {offsets = [0, 96], sizes = [1, 32], strides = [1, 1]} : vector<1x128xf32> to vector<1x32xf32>
    %76 = arith.mulf %73, %59 : vector<1x32xf32>
    %77 = arith.mulf %72, %74 : vector<1x32xf32>
    %78 = arith.addf %76, %77 : vector<1x32xf32>
    %79 = math.tanh %78 : vector<1x32xf32>
    %80 = arith.mulf %75, %79 : vector<1x32xf32>
    %81 = vector.extract_strided_slice %9 {offsets = [3, 0], sizes = [1, 128], strides = [1, 1]} : vector<8x128xf32> to vector<1x128xf32>
    %cst_22 = arith.constant dense<0.000000e+00> : vector<1x128xf32>
    %82 = tpu.matmul %80, %2, %cst_22 {dimension_numbers = #tpu.dot_dimension_numbers<[1], [0], [0], [1], [0, 0, 1, 1], [], []>} : vector<1x32xf32>, vector<32x128xf32>, vector<1x128xf32> -> vector<1x128xf32>
    %83 = arith.addf %81, %82 : vector<1x128xf32>
    %84 = math.tanh %83 : vector<1x128xf32>
    %85 = arith.negf %83 : vector<1x128xf32>
    %86 = math.exp %85 : vector<1x128xf32>
    %cst_23 = arith.constant 1.000000e+00 : f32
    %87 = vector.broadcast %cst_23 : f32 to vector<1x128xf32>
    %88 = arith.addf %87, %86 : vector<1x128xf32>
    %89 = arith.divf %87, %88 : vector<1x128xf32>
    %90 = arith.select %18, %84, %89 : vector<1x128xi1>, vector<1x128xf32>
    %91 = vector.extract_strided_slice %90 {offsets = [0, 0], sizes = [1, 32], strides = [1, 1]} : vector<1x128xf32> to vector<1x32xf32>
    %92 = vector.extract_strided_slice %90 {offsets = [0, 32], sizes = [1, 32], strides = [1, 1]} : vector<1x128xf32> to vector<1x32xf32>
    %93 = vector.extract_strided_slice %90 {offsets = [0, 64], sizes = [1, 32], strides = [1, 1]} : vector<1x128xf32> to vector<1x32xf32>
    %94 = vector.extract_strided_slice %90 {offsets = [0, 96], sizes = [1, 32], strides = [1, 1]} : vector<1x128xf32> to vector<1x32xf32>
    %95 = arith.mulf %92, %78 : vector<1x32xf32>
    %96 = arith.mulf %91, %93 : vector<1x32xf32>
    %97 = arith.addf %95, %96 : vector<1x32xf32>
    %98 = math.tanh %97 : vector<1x32xf32>
    %99 = arith.mulf %94, %98 : vector<1x32xf32>
    %100 = vector.extract_strided_slice %9 {offsets = [4, 0], sizes = [1, 128], strides = [1, 1]} : vector<8x128xf32> to vector<1x128xf32>
    %cst_24 = arith.constant dense<0.000000e+00> : vector<1x128xf32>
    %101 = tpu.matmul %99, %2, %cst_24 {dimension_numbers = #tpu.dot_dimension_numbers<[1], [0], [0], [1], [0, 0, 1, 1], [], []>} : vector<1x32xf32>, vector<32x128xf32>, vector<1x128xf32> -> vector<1x128xf32>
    %102 = arith.addf %100, %101 : vector<1x128xf32>
    %103 = math.tanh %102 : vector<1x128xf32>
    %104 = arith.negf %102 : vector<1x128xf32>
    %105 = math.exp %104 : vector<1x128xf32>
    %cst_25 = arith.constant 1.000000e+00 : f32
    %106 = vector.broadcast %cst_25 : f32 to vector<1x128xf32>
    %107 = arith.addf %106, %105 : vector<1x128xf32>
    %108 = arith.divf %106, %107 : vector<1x128xf32>
    %109 = arith.select %18, %103, %108 : vector<1x128xi1>, vector<1x128xf32>
    %110 = vector.extract_strided_slice %109 {offsets = [0, 0], sizes = [1, 32], strides = [1, 1]} : vector<1x128xf32> to vector<1x32xf32>
    %111 = vector.extract_strided_slice %109 {offsets = [0, 32], sizes = [1, 32], strides = [1, 1]} : vector<1x128xf32> to vector<1x32xf32>
    %112 = vector.extract_strided_slice %109 {offsets = [0, 64], sizes = [1, 32], strides = [1, 1]} : vector<1x128xf32> to vector<1x32xf32>
    %113 = vector.extract_strided_slice %109 {offsets = [0, 96], sizes = [1, 32], strides = [1, 1]} : vector<1x128xf32> to vector<1x32xf32>
    %114 = arith.mulf %111, %97 : vector<1x32xf32>
    %115 = arith.mulf %110, %112 : vector<1x32xf32>
    %116 = arith.addf %114, %115 : vector<1x32xf32>
    %117 = math.tanh %116 : vector<1x32xf32>
    %118 = arith.mulf %113, %117 : vector<1x32xf32>
    %119 = vector.extract_strided_slice %9 {offsets = [5, 0], sizes = [1, 128], strides = [1, 1]} : vector<8x128xf32> to vector<1x128xf32>
    %cst_26 = arith.constant dense<0.000000e+00> : vector<1x128xf32>
    %120 = tpu.matmul %118, %2, %cst_26 {dimension_numbers = #tpu.dot_dimension_numbers<[1], [0], [0], [1], [0, 0, 1, 1], [], []>} : vector<1x32xf32>, vector<32x128xf32>, vector<1x128xf32> -> vector<1x128xf32>
    %121 = arith.addf %119, %120 : vector<1x128xf32>
    %122 = math.tanh %121 : vector<1x128xf32>
    %123 = arith.negf %121 : vector<1x128xf32>
    %124 = math.exp %123 : vector<1x128xf32>
    %cst_27 = arith.constant 1.000000e+00 : f32
    %125 = vector.broadcast %cst_27 : f32 to vector<1x128xf32>
    %126 = arith.addf %125, %124 : vector<1x128xf32>
    %127 = arith.divf %125, %126 : vector<1x128xf32>
    %128 = arith.select %18, %122, %127 : vector<1x128xi1>, vector<1x128xf32>
    %129 = vector.extract_strided_slice %128 {offsets = [0, 0], sizes = [1, 32], strides = [1, 1]} : vector<1x128xf32> to vector<1x32xf32>
    %130 = vector.extract_strided_slice %128 {offsets = [0, 32], sizes = [1, 32], strides = [1, 1]} : vector<1x128xf32> to vector<1x32xf32>
    %131 = vector.extract_strided_slice %128 {offsets = [0, 64], sizes = [1, 32], strides = [1, 1]} : vector<1x128xf32> to vector<1x32xf32>
    %132 = vector.extract_strided_slice %128 {offsets = [0, 96], sizes = [1, 32], strides = [1, 1]} : vector<1x128xf32> to vector<1x32xf32>
    %133 = arith.mulf %130, %116 : vector<1x32xf32>
    %134 = arith.mulf %129, %131 : vector<1x32xf32>
    %135 = arith.addf %133, %134 : vector<1x32xf32>
    %136 = math.tanh %135 : vector<1x32xf32>
    %137 = arith.mulf %132, %136 : vector<1x32xf32>
    %138 = vector.extract_strided_slice %9 {offsets = [6, 0], sizes = [1, 128], strides = [1, 1]} : vector<8x128xf32> to vector<1x128xf32>
    %cst_28 = arith.constant dense<0.000000e+00> : vector<1x128xf32>
    %139 = tpu.matmul %137, %2, %cst_28 {dimension_numbers = #tpu.dot_dimension_numbers<[1], [0], [0], [1], [0, 0, 1, 1], [], []>} : vector<1x32xf32>, vector<32x128xf32>, vector<1x128xf32> -> vector<1x128xf32>
    %140 = arith.addf %138, %139 : vector<1x128xf32>
    %141 = math.tanh %140 : vector<1x128xf32>
    %142 = arith.negf %140 : vector<1x128xf32>
    %143 = math.exp %142 : vector<1x128xf32>
    %cst_29 = arith.constant 1.000000e+00 : f32
    %144 = vector.broadcast %cst_29 : f32 to vector<1x128xf32>
    %145 = arith.addf %144, %143 : vector<1x128xf32>
    %146 = arith.divf %144, %145 : vector<1x128xf32>
    %147 = arith.select %18, %141, %146 : vector<1x128xi1>, vector<1x128xf32>
    %148 = vector.extract_strided_slice %147 {offsets = [0, 0], sizes = [1, 32], strides = [1, 1]} : vector<1x128xf32> to vector<1x32xf32>
    %149 = vector.extract_strided_slice %147 {offsets = [0, 32], sizes = [1, 32], strides = [1, 1]} : vector<1x128xf32> to vector<1x32xf32>
    %150 = vector.extract_strided_slice %147 {offsets = [0, 64], sizes = [1, 32], strides = [1, 1]} : vector<1x128xf32> to vector<1x32xf32>
    %151 = vector.extract_strided_slice %147 {offsets = [0, 96], sizes = [1, 32], strides = [1, 1]} : vector<1x128xf32> to vector<1x32xf32>
    %152 = arith.mulf %149, %135 : vector<1x32xf32>
    %153 = arith.mulf %148, %150 : vector<1x32xf32>
    %154 = arith.addf %152, %153 : vector<1x32xf32>
    %155 = math.tanh %154 : vector<1x32xf32>
    %156 = arith.mulf %151, %155 : vector<1x32xf32>
    %157 = vector.extract_strided_slice %9 {offsets = [7, 0], sizes = [1, 128], strides = [1, 1]} : vector<8x128xf32> to vector<1x128xf32>
    %cst_30 = arith.constant dense<0.000000e+00> : vector<1x128xf32>
    %158 = tpu.matmul %156, %2, %cst_30 {dimension_numbers = #tpu.dot_dimension_numbers<[1], [0], [0], [1], [0, 0, 1, 1], [], []>} : vector<1x32xf32>, vector<32x128xf32>, vector<1x128xf32> -> vector<1x128xf32>
    %159 = arith.addf %157, %158 : vector<1x128xf32>
    %160 = math.tanh %159 : vector<1x128xf32>
    %161 = arith.negf %159 : vector<1x128xf32>
    %162 = math.exp %161 : vector<1x128xf32>
    %cst_31 = arith.constant 1.000000e+00 : f32
    %163 = vector.broadcast %cst_31 : f32 to vector<1x128xf32>
    %164 = arith.addf %163, %162 : vector<1x128xf32>
    %165 = arith.divf %163, %164 : vector<1x128xf32>
    %166 = arith.select %18, %160, %165 : vector<1x128xi1>, vector<1x128xf32>
    %167 = vector.extract_strided_slice %166 {offsets = [0, 0], sizes = [1, 32], strides = [1, 1]} : vector<1x128xf32> to vector<1x32xf32>
    %168 = vector.extract_strided_slice %166 {offsets = [0, 32], sizes = [1, 32], strides = [1, 1]} : vector<1x128xf32> to vector<1x32xf32>
    %169 = vector.extract_strided_slice %166 {offsets = [0, 64], sizes = [1, 32], strides = [1, 1]} : vector<1x128xf32> to vector<1x32xf32>
    %170 = vector.extract_strided_slice %166 {offsets = [0, 96], sizes = [1, 32], strides = [1, 1]} : vector<1x128xf32> to vector<1x32xf32>
    %171 = arith.mulf %168, %154 : vector<1x32xf32>
    %172 = arith.mulf %167, %169 : vector<1x32xf32>
    %173 = arith.addf %171, %172 : vector<1x32xf32>
    %174 = math.tanh %173 : vector<1x32xf32>
    %175 = arith.mulf %170, %174 : vector<1x32xf32>
    %cst_32 = arith.constant 0.000000e+00 : f32
    %176 = vector.broadcast %cst_32 : f32 to vector<1x32xf32>
    %cst_33 = arith.constant dense<0.000000e+00> : vector<1x128xf32>
    %177 = tpu.matmul %175, %4, %cst_33 {dimension_numbers = #tpu.dot_dimension_numbers<[1], [0], [0], [1], [0, 0, 1, 1], [], []>} : vector<1x32xf32>, vector<32x128xf32>, vector<1x128xf32> -> vector<1x128xf32>
    %178 = arith.addf %177, %6 : vector<1x128xf32>
    %179 = math.tanh %178 : vector<1x128xf32>
    %180 = arith.negf %178 : vector<1x128xf32>
    %181 = math.exp %180 : vector<1x128xf32>
    %cst_34 = arith.constant 1.000000e+00 : f32
    %182 = vector.broadcast %cst_34 : f32 to vector<1x128xf32>
    %183 = arith.addf %182, %181 : vector<1x128xf32>
    %184 = arith.divf %182, %183 : vector<1x128xf32>
    %185 = arith.select %24, %179, %184 : vector<1x128xi1>, vector<1x128xf32>
    %186 = vector.extract_strided_slice %185 {offsets = [0, 0], sizes = [1, 32], strides = [1, 1]} : vector<1x128xf32> to vector<1x32xf32>
    %187 = vector.extract_strided_slice %185 {offsets = [0, 32], sizes = [1, 32], strides = [1, 1]} : vector<1x128xf32> to vector<1x32xf32>
    %188 = vector.extract_strided_slice %185 {offsets = [0, 64], sizes = [1, 32], strides = [1, 1]} : vector<1x128xf32> to vector<1x32xf32>
    %189 = vector.extract_strided_slice %185 {offsets = [0, 96], sizes = [1, 32], strides = [1, 1]} : vector<1x128xf32> to vector<1x32xf32>
    %190 = arith.mulf %187, %176 : vector<1x32xf32>
    %191 = arith.mulf %186, %188 : vector<1x32xf32>
    %192 = arith.addf %190, %191 : vector<1x32xf32>
    %193 = math.tanh %192 : vector<1x32xf32>
    %194 = arith.mulf %189, %193 : vector<1x32xf32>
    %c7 = arith.constant 7 : index
    %c0_35 = arith.constant 0 : index
    %195 = vector.load %arg7[%c7, %c0_35] : memref<8x32xf32, #tpu.memory_space<vmem>>, vector<1x32xf32>
    tpu.vector_store %arg7[%c7, %c0_35], %194 {strides = array<i32>} : memref<8x32xf32, #tpu.memory_space<vmem>>, vector<1x32xf32>,
    %196 = vector.extract_strided_slice %12 {offsets = [7, 0], sizes = [1, 128], strides = [1, 1]} : vector<8x128xf32> to vector<1x128xf32>
    %cst_36 = arith.constant dense<0.000000e+00> : vector<1x128xf32>
    %197 = tpu.matmul %194, %5, %cst_36 {dimension_numbers = #tpu.dot_dimension_numbers<[1], [0], [0], [1], [0, 0, 1, 1], [], []>} : vector<1x32xf32>, vector<32x128xf32>, vector<1x128xf32> -> vector<1x128xf32>
    %198 = arith.addf %196, %197 : vector<1x128xf32>
    %199 = math.tanh %198 : vector<1x128xf32>
    %200 = arith.negf %198 : vector<1x128xf32>
    %201 = math.exp %200 : vector<1x128xf32>
    %cst_37 = arith.constant 1.000000e+00 : f32
    %202 = vector.broadcast %cst_37 : f32 to vector<1x128xf32>
    %203 = arith.addf %202, %201 : vector<1x128xf32>
    %204 = arith.divf %202, %203 : vector<1x128xf32>
    %205 = arith.select %24, %199, %204 : vector<1x128xi1>, vector<1x128xf32>
    %206 = vector.extract_strided_slice %205 {offsets = [0, 0], sizes = [1, 32], strides = [1, 1]} : vector<1x128xf32> to vector<1x32xf32>
    %207 = vector.extract_strided_slice %205 {offsets = [0, 32], sizes = [1, 32], strides = [1, 1]} : vector<1x128xf32> to vector<1x32xf32>
    %208 = vector.extract_strided_slice %205 {offsets = [0, 64], sizes = [1, 32], strides = [1, 1]} : vector<1x128xf32> to vector<1x32xf32>
    %209 = vector.extract_strided_slice %205 {offsets = [0, 96], sizes = [1, 32], strides = [1, 1]} : vector<1x128xf32> to vector<1x32xf32>
    %210 = arith.mulf %207, %192 : vector<1x32xf32>
    %211 = arith.mulf %206, %208 : vector<1x32xf32>
    %212 = arith.addf %210, %211 : vector<1x32xf32>
    %213 = math.tanh %212 : vector<1x32xf32>
    %214 = arith.mulf %209, %213 : vector<1x32xf32>
    %c6 = arith.constant 6 : index
    %c0_38 = arith.constant 0 : index
    %215 = vector.load %arg7[%c6, %c0_38] : memref<8x32xf32, #tpu.memory_space<vmem>>, vector<1x32xf32>
    tpu.vector_store %arg7[%c6, %c0_38], %214 {strides = array<i32>} : memref<8x32xf32, #tpu.memory_space<vmem>>, vector<1x32xf32>,
    %216 = vector.extract_strided_slice %12 {offsets = [6, 0], sizes = [1, 128], strides = [1, 1]} : vector<8x128xf32> to vector<1x128xf32>
    %cst_39 = arith.constant dense<0.000000e+00> : vector<1x128xf32>
    %217 = tpu.matmul %214, %5, %cst_39 {dimension_numbers = #tpu.dot_dimension_numbers<[1], [0], [0], [1], [0, 0, 1, 1], [], []>} : vector<1x32xf32>, vector<32x128xf32>, vector<1x128xf32> -> vector<1x128xf32>
    %218 = arith.addf %216, %217 : vector<1x128xf32>
    %219 = math.tanh %218 : vector<1x128xf32>
    %220 = arith.negf %218 : vector<1x128xf32>
    %221 = math.exp %220 : vector<1x128xf32>
    %cst_40 = arith.constant 1.000000e+00 : f32
    %222 = vector.broadcast %cst_40 : f32 to vector<1x128xf32>
    %223 = arith.addf %222, %221 : vector<1x128xf32>
    %224 = arith.divf %222, %223 : vector<1x128xf32>
    %225 = arith.select %24, %219, %224 : vector<1x128xi1>, vector<1x128xf32>
    %226 = vector.extract_strided_slice %225 {offsets = [0, 0], sizes = [1, 32], strides = [1, 1]} : vector<1x128xf32> to vector<1x32xf32>
    %227 = vector.extract_strided_slice %225 {offsets = [0, 32], sizes = [1, 32], strides = [1, 1]} : vector<1x128xf32> to vector<1x32xf32>
    %228 = vector.extract_strided_slice %225 {offsets = [0, 64], sizes = [1, 32], strides = [1, 1]} : vector<1x128xf32> to vector<1x32xf32>
    %229 = vector.extract_strided_slice %225 {offsets = [0, 96], sizes = [1, 32], strides = [1, 1]} : vector<1x128xf32> to vector<1x32xf32>
    %230 = arith.mulf %227, %212 : vector<1x32xf32>
    %231 = arith.mulf %226, %228 : vector<1x32xf32>
    %232 = arith.addf %230, %231 : vector<1x32xf32>
    %233 = math.tanh %232 : vector<1x32xf32>
    %234 = arith.mulf %229, %233 : vector<1x32xf32>
    %c5 = arith.constant 5 : index
    %c0_41 = arith.constant 0 : index
    %235 = vector.load %arg7[%c5, %c0_41] : memref<8x32xf32, #tpu.memory_space<vmem>>, vector<1x32xf32>
    tpu.vector_store %arg7[%c5, %c0_41], %234 {strides = array<i32>} : memref<8x32xf32, #tpu.memory_space<vmem>>, vector<1x32xf32>,
    %236 = vector.extract_strided_slice %12 {offsets = [5, 0], sizes = [1, 128], strides = [1, 1]} : vector<8x128xf32> to vector<1x128xf32>
    %cst_42 = arith.constant dense<0.000000e+00> : vector<1x128xf32>
    %237 = tpu.matmul %234, %5, %cst_42 {dimension_numbers = #tpu.dot_dimension_numbers<[1], [0], [0], [1], [0, 0, 1, 1], [], []>} : vector<1x32xf32>, vector<32x128xf32>, vector<1x128xf32> -> vector<1x128xf32>
    %238 = arith.addf %236, %237 : vector<1x128xf32>
    %239 = math.tanh %238 : vector<1x128xf32>
    %240 = arith.negf %238 : vector<1x128xf32>
    %241 = math.exp %240 : vector<1x128xf32>
    %cst_43 = arith.constant 1.000000e+00 : f32
    %242 = vector.broadcast %cst_43 : f32 to vector<1x128xf32>
    %243 = arith.addf %242, %241 : vector<1x128xf32>
    %244 = arith.divf %242, %243 : vector<1x128xf32>
    %245 = arith.select %24, %239, %244 : vector<1x128xi1>, vector<1x128xf32>
    %246 = vector.extract_strided_slice %245 {offsets = [0, 0], sizes = [1, 32], strides = [1, 1]} : vector<1x128xf32> to vector<1x32xf32>
    %247 = vector.extract_strided_slice %245 {offsets = [0, 32], sizes = [1, 32], strides = [1, 1]} : vector<1x128xf32> to vector<1x32xf32>
    %248 = vector.extract_strided_slice %245 {offsets = [0, 64], sizes = [1, 32], strides = [1, 1]} : vector<1x128xf32> to vector<1x32xf32>
    %249 = vector.extract_strided_slice %245 {offsets = [0, 96], sizes = [1, 32], strides = [1, 1]} : vector<1x128xf32> to vector<1x32xf32>
    %250 = arith.mulf %247, %232 : vector<1x32xf32>
    %251 = arith.mulf %246, %248 : vector<1x32xf32>
    %252 = arith.addf %250, %251 : vector<1x32xf32>
    %253 = math.tanh %252 : vector<1x32xf32>
    %254 = arith.mulf %249, %253 : vector<1x32xf32>
    %c4 = arith.constant 4 : index
    %c0_44 = arith.constant 0 : index
    %255 = vector.load %arg7[%c4, %c0_44] : memref<8x32xf32, #tpu.memory_space<vmem>>, vector<1x32xf32>
    tpu.vector_store %arg7[%c4, %c0_44], %254 {strides = array<i32>} : memref<8x32xf32, #tpu.memory_space<vmem>>, vector<1x32xf32>,
    %256 = vector.extract_strided_slice %12 {offsets = [4, 0], sizes = [1, 128], strides = [1, 1]} : vector<8x128xf32> to vector<1x128xf32>
    %cst_45 = arith.constant dense<0.000000e+00> : vector<1x128xf32>
    %257 = tpu.matmul %254, %5, %cst_45 {dimension_numbers = #tpu.dot_dimension_numbers<[1], [0], [0], [1], [0, 0, 1, 1], [], []>} : vector<1x32xf32>, vector<32x128xf32>, vector<1x128xf32> -> vector<1x128xf32>
    %258 = arith.addf %256, %257 : vector<1x128xf32>
    %259 = math.tanh %258 : vector<1x128xf32>
    %260 = arith.negf %258 : vector<1x128xf32>
    %261 = math.exp %260 : vector<1x128xf32>
    %cst_46 = arith.constant 1.000000e+00 : f32
    %262 = vector.broadcast %cst_46 : f32 to vector<1x128xf32>
    %263 = arith.addf %262, %261 : vector<1x128xf32>
    %264 = arith.divf %262, %263 : vector<1x128xf32>
    %265 = arith.select %24, %259, %264 : vector<1x128xi1>, vector<1x128xf32>
    %266 = vector.extract_strided_slice %265 {offsets = [0, 0], sizes = [1, 32], strides = [1, 1]} : vector<1x128xf32> to vector<1x32xf32>
    %267 = vector.extract_strided_slice %265 {offsets = [0, 32], sizes = [1, 32], strides = [1, 1]} : vector<1x128xf32> to vector<1x32xf32>
    %268 = vector.extract_strided_slice %265 {offsets = [0, 64], sizes = [1, 32], strides = [1, 1]} : vector<1x128xf32> to vector<1x32xf32>
    %269 = vector.extract_strided_slice %265 {offsets = [0, 96], sizes = [1, 32], strides = [1, 1]} : vector<1x128xf32> to vector<1x32xf32>
    %270 = arith.mulf %267, %252 : vector<1x32xf32>
    %271 = arith.mulf %266, %268 : vector<1x32xf32>
    %272 = arith.addf %270, %271 : vector<1x32xf32>
    %273 = math.tanh %272 : vector<1x32xf32>
    %274 = arith.mulf %269, %273 : vector<1x32xf32>
    %c3 = arith.constant 3 : index
    %c0_47 = arith.constant 0 : index
    %275 = vector.load %arg7[%c3, %c0_47] : memref<8x32xf32, #tpu.memory_space<vmem>>, vector<1x32xf32>
    tpu.vector_store %arg7[%c3, %c0_47], %274 {strides = array<i32>} : memref<8x32xf32, #tpu.memory_space<vmem>>, vector<1x32xf32>,
    %276 = vector.extract_strided_slice %12 {offsets = [3, 0], sizes = [1, 128], strides = [1, 1]} : vector<8x128xf32> to vector<1x128xf32>
    %cst_48 = arith.constant dense<0.000000e+00> : vector<1x128xf32>
    %277 = tpu.matmul %274, %5, %cst_48 {dimension_numbers = #tpu.dot_dimension_numbers<[1], [0], [0], [1], [0, 0, 1, 1], [], []>} : vector<1x32xf32>, vector<32x128xf32>, vector<1x128xf32> -> vector<1x128xf32>
    %278 = arith.addf %276, %277 : vector<1x128xf32>
    %279 = math.tanh %278 : vector<1x128xf32>
    %280 = arith.negf %278 : vector<1x128xf32>
    %281 = math.exp %280 : vector<1x128xf32>
    %cst_49 = arith.constant 1.000000e+00 : f32
    %282 = vector.broadcast %cst_49 : f32 to vector<1x128xf32>
    %283 = arith.addf %282, %281 : vector<1x128xf32>
    %284 = arith.divf %282, %283 : vector<1x128xf32>
    %285 = arith.select %24, %279, %284 : vector<1x128xi1>, vector<1x128xf32>
    %286 = vector.extract_strided_slice %285 {offsets = [0, 0], sizes = [1, 32], strides = [1, 1]} : vector<1x128xf32> to vector<1x32xf32>
    %287 = vector.extract_strided_slice %285 {offsets = [0, 32], sizes = [1, 32], strides = [1, 1]} : vector<1x128xf32> to vector<1x32xf32>
    %288 = vector.extract_strided_slice %285 {offsets = [0, 64], sizes = [1, 32], strides = [1, 1]} : vector<1x128xf32> to vector<1x32xf32>
    %289 = vector.extract_strided_slice %285 {offsets = [0, 96], sizes = [1, 32], strides = [1, 1]} : vector<1x128xf32> to vector<1x32xf32>
    %290 = arith.mulf %287, %272 : vector<1x32xf32>
    %291 = arith.mulf %286, %288 : vector<1x32xf32>
    %292 = arith.addf %290, %291 : vector<1x32xf32>
    %293 = math.tanh %292 : vector<1x32xf32>
    %294 = arith.mulf %289, %293 : vector<1x32xf32>
    %c2 = arith.constant 2 : index
    %c0_50 = arith.constant 0 : index
    %295 = vector.load %arg7[%c2, %c0_50] : memref<8x32xf32, #tpu.memory_space<vmem>>, vector<1x32xf32>
    tpu.vector_store %arg7[%c2, %c0_50], %294 {strides = array<i32>} : memref<8x32xf32, #tpu.memory_space<vmem>>, vector<1x32xf32>,
    %296 = vector.extract_strided_slice %12 {offsets = [2, 0], sizes = [1, 128], strides = [1, 1]} : vector<8x128xf32> to vector<1x128xf32>
    %cst_51 = arith.constant dense<0.000000e+00> : vector<1x128xf32>
    %297 = tpu.matmul %294, %5, %cst_51 {dimension_numbers = #tpu.dot_dimension_numbers<[1], [0], [0], [1], [0, 0, 1, 1], [], []>} : vector<1x32xf32>, vector<32x128xf32>, vector<1x128xf32> -> vector<1x128xf32>
    %298 = arith.addf %296, %297 : vector<1x128xf32>
    %299 = math.tanh %298 : vector<1x128xf32>
    %300 = arith.negf %298 : vector<1x128xf32>
    %301 = math.exp %300 : vector<1x128xf32>
    %cst_52 = arith.constant 1.000000e+00 : f32
    %302 = vector.broadcast %cst_52 : f32 to vector<1x128xf32>
    %303 = arith.addf %302, %301 : vector<1x128xf32>
    %304 = arith.divf %302, %303 : vector<1x128xf32>
    %305 = arith.select %24, %299, %304 : vector<1x128xi1>, vector<1x128xf32>
    %306 = vector.extract_strided_slice %305 {offsets = [0, 0], sizes = [1, 32], strides = [1, 1]} : vector<1x128xf32> to vector<1x32xf32>
    %307 = vector.extract_strided_slice %305 {offsets = [0, 32], sizes = [1, 32], strides = [1, 1]} : vector<1x128xf32> to vector<1x32xf32>
    %308 = vector.extract_strided_slice %305 {offsets = [0, 64], sizes = [1, 32], strides = [1, 1]} : vector<1x128xf32> to vector<1x32xf32>
    %309 = vector.extract_strided_slice %305 {offsets = [0, 96], sizes = [1, 32], strides = [1, 1]} : vector<1x128xf32> to vector<1x32xf32>
    %310 = arith.mulf %307, %292 : vector<1x32xf32>
    %311 = arith.mulf %306, %308 : vector<1x32xf32>
    %312 = arith.addf %310, %311 : vector<1x32xf32>
    %313 = math.tanh %312 : vector<1x32xf32>
    %314 = arith.mulf %309, %313 : vector<1x32xf32>
    %c1 = arith.constant 1 : index
    %c0_53 = arith.constant 0 : index
    %315 = vector.load %arg7[%c1, %c0_53] : memref<8x32xf32, #tpu.memory_space<vmem>>, vector<1x32xf32>
    tpu.vector_store %arg7[%c1, %c0_53], %314 {strides = array<i32>} : memref<8x32xf32, #tpu.memory_space<vmem>>, vector<1x32xf32>,
    %316 = vector.extract_strided_slice %12 {offsets = [1, 0], sizes = [1, 128], strides = [1, 1]} : vector<8x128xf32> to vector<1x128xf32>
    %cst_54 = arith.constant dense<0.000000e+00> : vector<1x128xf32>
    %317 = tpu.matmul %314, %5, %cst_54 {dimension_numbers = #tpu.dot_dimension_numbers<[1], [0], [0], [1], [0, 0, 1, 1], [], []>} : vector<1x32xf32>, vector<32x128xf32>, vector<1x128xf32> -> vector<1x128xf32>
    %318 = arith.addf %316, %317 : vector<1x128xf32>
    %319 = math.tanh %318 : vector<1x128xf32>
    %320 = arith.negf %318 : vector<1x128xf32>
    %321 = math.exp %320 : vector<1x128xf32>
    %cst_55 = arith.constant 1.000000e+00 : f32
    %322 = vector.broadcast %cst_55 : f32 to vector<1x128xf32>
    %323 = arith.addf %322, %321 : vector<1x128xf32>
    %324 = arith.divf %322, %323 : vector<1x128xf32>
    %325 = arith.select %24, %319, %324 : vector<1x128xi1>, vector<1x128xf32>
    %326 = vector.extract_strided_slice %325 {offsets = [0, 0], sizes = [1, 32], strides = [1, 1]} : vector<1x128xf32> to vector<1x32xf32>
    %327 = vector.extract_strided_slice %325 {offsets = [0, 32], sizes = [1, 32], strides = [1, 1]} : vector<1x128xf32> to vector<1x32xf32>
    %328 = vector.extract_strided_slice %325 {offsets = [0, 64], sizes = [1, 32], strides = [1, 1]} : vector<1x128xf32> to vector<1x32xf32>
    %329 = vector.extract_strided_slice %325 {offsets = [0, 96], sizes = [1, 32], strides = [1, 1]} : vector<1x128xf32> to vector<1x32xf32>
    %330 = arith.mulf %327, %312 : vector<1x32xf32>
    %331 = arith.mulf %326, %328 : vector<1x32xf32>
    %332 = arith.addf %330, %331 : vector<1x32xf32>
    %333 = math.tanh %332 : vector<1x32xf32>
    %334 = arith.mulf %329, %333 : vector<1x32xf32>
    %c0_56 = arith.constant 0 : index
    %c0_57 = arith.constant 0 : index
    %335 = vector.load %arg7[%c0_56, %c0_57] : memref<8x32xf32, #tpu.memory_space<vmem>>, vector<1x32xf32>
    tpu.vector_store %arg7[%c0_56, %c0_57], %334 {strides = array<i32>} : memref<8x32xf32, #tpu.memory_space<vmem>>, vector<1x32xf32>,
    return
  }
}

</mosaic_0001>

<llo_original>
// kernel: autoencoder_forward.1
$region0: #{autoencoder_forward.1}
  #allocation0 [shape = 'u32[]', space=smem, size = 0x4, offset = 0x4, fixed_abs, tag = 'smem constant byte address 0x4 - core index']
  #allocation1 [shape = 'u32[72,128]{1,0:T(1,128)}', space=vmem, size = 0x9000, scoped, tag = 'internal scratch']
  %s0 = inlined_call_operand.hbm [shape: f32[8,32], index: 0, kind: input, shape index: {}]
  %s1 = inlined_call_operand.hbm [shape: f32[32,128], index: 1, kind: input, shape index: {}]
  %s2 = inlined_call_operand.hbm [shape: f32[32,128], index: 2, kind: input, shape index: {}]
  %s3 = inlined_call_operand.vmem [shape: f32[1,128], index: 3, kind: input, shape index: {}]
  %s4 = inlined_call_operand.hbm [shape: f32[32,128], index: 4, kind: input, shape index: {}]
  %s5 = inlined_call_operand.hbm [shape: f32[32,128], index: 5, kind: input, shape index: {}]
  %s6 = inlined_call_operand.hbm [shape: f32[1,128], index: 6, kind: input, shape index: {}]
  %s7 = inlined_call_operand.hbm [shape: f32[8,32], index: 7, kind: output, shape index: {}]
  %s8 = sld [smem:[#allocation0]]
  $region62: #{autoencoder_forward.1} parent=0
    _
  %s10 = ssub.s32 1, %s8
  %s11 = scalar_select 0, %s10, %s8
  $region1: #{autoencoder_forward.1} parent=0
    #allocation2 [shape = 'u8[4096]{0}', space=vmem, size = 0x1000, scoped, tag = 'input window, operand 0, single buffered']
    #allocation3 [shape = 's32[1]{0}', space=sflag, size = 0x4, scoped, tag = 'scoped memory for autoencoder_forward.1']
    #allocation4 [shape = 's32[1]{0}', space=sflag, size = 0x4, scoped, tag = 'scoped memory for autoencoder_forward.1']
    #allocation5 [shape = 'u8[16384]{0}', space=vmem, size = 0x4000, scoped, tag = 'input window, operand 1, single buffered']
    #allocation6 [shape = 's32[1]{0}', space=sflag, size = 0x4, scoped, tag = 'scoped memory for autoencoder_forward.1']
    #allocation7 [shape = 'u8[16384]{0}', space=vmem, size = 0x4000, scoped, tag = 'input window, operand 2, single buffered']
    #allocation8 [shape = 'u8[16384]{0}', space=vmem, size = 0x4000, scoped, tag = 'input window, operand 4, single buffered']
    #allocation9 [shape = 's32[1]{0}', space=sflag, size = 0x4, scoped, tag = 'scoped memory for autoencoder_forward.1']
    #allocation10 [shape = 'u8[16384]{0}', space=vmem, size = 0x4000, scoped, tag = 'input window, operand 5, single buffered']
    #allocation11 [shape = 'u8[512]{0}', space=vmem, size = 0x400, scoped, tag = 'input window, operand 6, single buffered']
    #allocation12 [shape = 's32[1]{0}', space=sflag, size = 0x4, scoped, tag = 'scoped memory for autoencoder_forward.1']
    #allocation13 [shape = 'u8[4096]{0}', space=vmem, size = 0x1000, scoped, tag = 'output window, operand 0, single buffered']
    %12 = vsyncpa [#allocation3], 0
    %13 = vsyncpa [#allocation6], 0
    %14 = vsyncpa [#allocation9], 0
    %15 = vsyncpa [#allocation12], 0
    %16 = vsyncpa [#allocation4], 0
    // Predicated region
    $region2: #{autoencoder_forward.1} parent=1 // pred_check
      _
    $region3: #{autoencoder_forward.1} parent=1 // pred_check_branch
      %18 = sbr.rel (0) target = $region5
    $region4: #{autoencoder_forward.1} parent=1 // pred_region
      %20 = vsyncadd [#allocation3], 0
      %s22 = sshll.u32 %s0, 4
      %s23 = int_to_ptr.hbm [resolvable:$true] %s22
      %s24 = sshll.u32 [#allocation2], 4
      %s25 = int_to_ptr.vmem [resolvable:$true] %s24
      %27 = dma.hbm_to_vmem [thread:$0]  %s23, 128, %s25, [#allocation3]
    $region5: #{autoencoder_forward.1} parent=1 // pred_fallthru
      _
    // Predicated region
    $region6: #{autoencoder_forward.1} parent=1 // pred_check
      _
    $region7: #{autoencoder_forward.1} parent=1 // pred_check_branch
      %29 = sbr.rel (0) target = $region9
    $region8: #{autoencoder_forward.1} parent=1 // pred_region
      %31 = vsyncadd [#allocation6], 0
      %s32 = sshll.u32 %s1, 4
      %s33 = int_to_ptr.hbm [resolvable:$true] %s32
      %s34 = sshll.u32 [#allocation5], 4
      %s35 = int_to_ptr.vmem [resolvable:$true] %s34
      %40 = dma.hbm_to_vmem [thread:$0]  %s33, 512, %s35, [#allocation6], 128, 128, 8
    $region9: #{autoencoder_forward.1} parent=1 // pred_fallthru
      _
    // Predicated region
    $region10: #{autoencoder_forward.1} parent=1 // pred_check
      _
    $region11: #{autoencoder_forward.1} parent=1 // pred_check_branch
      %42 = sbr.rel (0) target = $region13
    $region12: #{autoencoder_forward.1} parent=1 // pred_region
      %44 = vsyncadd [#allocation6], 0
      %s45 = sshll.u32 %s2, 4
      %s46 = int_to_ptr.hbm [resolvable:$true] %s45
      %s47 = sshll.u32 [#allocation7], 4
      %s48 = int_to_ptr.vmem [resolvable:$true] %s47
      %53 = dma.hbm_to_vmem [thread:$0]  %s46, 512, %s48, [#allocation6], 128, 128, 8
    $region13: #{autoencoder_forward.1} parent=1 // pred_fallthru
      _
    // Predicated region
    $region14: #{autoencoder_forward.1} parent=1 // pred_check
      _
    $region15: #{autoencoder_forward.1} parent=1 // pred_check_branch
      %55 = sbr.rel (0) target = $region17
    $region16: #{autoencoder_forward.1} parent=1 // pred_region
      _
    $region17: #{autoencoder_forward.1} parent=1 // pred_fallthru
      _
    // Predicated region
    $region18: #{autoencoder_forward.1} parent=1 // pred_check
      _
    $region19: #{autoencoder_forward.1} parent=1 // pred_check_branch
      %57 = sbr.rel (0) target = $region21
    $region20: #{autoencoder_forward.1} parent=1 // pred_region
      %59 = vsyncadd [#allocation9], 0
      %s60 = sshll.u32 %s4, 4
      %s61 = int_to_ptr.hbm [resolvable:$true] %s60
      %s62 = sshll.u32 [#allocation8], 4
      %s63 = int_to_ptr.vmem [resolvable:$true] %s62
      %68 = dma.hbm_to_vmem [thread:$0]  %s61, 512, %s63, [#allocation9], 128, 128, 8
    $region21: #{autoencoder_forward.1} parent=1 // pred_fallthru
      _
    // Predicated region
    $region22: #{autoencoder_forward.1} parent=1 // pred_check
      _
    $region23: #{autoencoder_forward.1} parent=1 // pred_check_branch
      %70 = sbr.rel (0) target = $region25
    $region24: #{autoencoder_forward.1} parent=1 // pred_region
      %72 = vsyncadd [#allocation9], 0
      %s73 = sshll.u32 %s5, 4
      %s74 = int_to_ptr.hbm [resolvable:$true] %s73
      %s75 = sshll.u32 [#allocation10], 4
      %s76 = int_to_ptr.vmem [resolvable:$true] %s75
      %81 = dma.hbm_to_vmem [thread:$0]  %s74, 512, %s76, [#allocation9], 128, 128, 8
    $region25: #{autoencoder_forward.1} parent=1 // pred_fallthru
      _
    // Predicated region
    $region26: #{autoencoder_forward.1} parent=1 // pred_check
      _
    $region27: #{autoencoder_forward.1} parent=1 // pred_check_branch
      %83 = sbr.rel (0) target = $region29
    $region28: #{autoencoder_forward.1} parent=1 // pred_region
      %85 = vsyncadd [#allocation12], 0
      %s87 = sshll.u32 %s6, 4
      %s88 = int_to_ptr.hbm [resolvable:$true] %s87
      %s89 = sshll.u32 [#allocation11], 4
      %s90 = int_to_ptr.vmem [resolvable:$true] %s89
      %92 = dma.hbm_to_vmem [thread:$0]  %s88, 16, %s90, [#allocation12]
    $region29: #{autoencoder_forward.1} parent=1 // pred_fallthru
      _
    // Predicated region
    $region30: #{autoencoder_forward.1} parent=1 // pred_check
      _
    $region31: #{autoencoder_forward.1} parent=1 // pred_check_branch
      %94 = sbr.rel (0) target = $region33
    $region32: #{autoencoder_forward.1} parent=1 // pred_region
      %96 = dma.done [#allocation3], 128
    $region33: #{autoencoder_forward.1} parent=1 // pred_fallthru
      _
    // Predicated region
    $region34: #{autoencoder_forward.1} parent=1 // pred_check
      _
    $region35: #{autoencoder_forward.1} parent=1 // pred_check_branch
      %98 = sbr.rel (0) target = $region37
    $region36: #{autoencoder_forward.1} parent=1 // pred_region
      %100 = dma.done [#allocation6], 512
    $region37: #{autoencoder_forward.1} parent=1 // pred_fallthru
      _
    // Predicated region
    $region38: #{autoencoder_forward.1} parent=1 // pred_check
      _
    $region39: #{autoencoder_forward.1} parent=1 // pred_check_branch
      %102 = sbr.rel (0) target = $region41
    $region40: #{autoencoder_forward.1} parent=1 // pred_region
      %104 = dma.done [#allocation6], 512
    $region41: #{autoencoder_forward.1} parent=1 // pred_fallthru
      _
    // Predicated region
    $region42: #{autoencoder_forward.1} parent=1 // pred_check
      _
    $region43: #{autoencoder_forward.1} parent=1 // pred_check_branch
      %106 = sbr.rel (0) target = $region45
    $region44: #{autoencoder_forward.1} parent=1 // pred_region
      %108 = dma.done [#allocation9], 512
    $region45: #{autoencoder_forward.1} parent=1 // pred_fallthru
      _
    // Predicated region
    $region46: #{autoencoder_forward.1} parent=1 // pred_check
      _
    $region47: #{autoencoder_forward.1} parent=1 // pred_check_branch
      %110 = sbr.rel (0) target = $region49
    $region48: #{autoencoder_forward.1} parent=1 // pred_region
      %112 = dma.done [#allocation9], 512
    $region49: #{autoencoder_forward.1} parent=1 // pred_fallthru
      _
    // Predicated region
    $region50: #{autoencoder_forward.1} parent=1 // pred_check
      _
    $region51: #{autoencoder_forward.1} parent=1 // pred_check_branch
      %114 = sbr.rel (0) target = $region53
    $region52: #{autoencoder_forward.1} parent=1 // pred_region
      %116 = dma.done [#allocation12], 16
    $region53: #{autoencoder_forward.1} parent=1 // pred_fallthru
      _
    %v117 = vld [vmem:[#allocation2] sm:$0xff]
    %v118 = vld [vmem:[#allocation5] sm:$0xff]
    %v119 = vld [vmem:[#allocation5 + $0x8] sm:$0xff]
    %v120 = vld [vmem:[#allocation5 + $0x10] sm:$0xff]
    %v121 = vld [vmem:[#allocation5 + $0x18] sm:$0xff]
    %v122 = vld [vmem:[#allocation7] sm:$0xff]
    %v123 = vld [vmem:[#allocation7 + $0x8] sm:$0xff]
    %v124 = vld [vmem:[#allocation7 + $0x10] sm:$0xff]
    %v125 = vld [vmem:[#allocation7 + $0x18] sm:$0xff]
    %v126 = vld [vmem:[%s3] sm:$0x1]
    %v127 = vld [vmem:[#allocation8] sm:$0xff]
    %v128 = vld [vmem:[#allocation8 + $0x8] sm:$0xff]
    %v129 = vld [vmem:[#allocation8 + $0x10] sm:$0xff]
    %v130 = vld [vmem:[#allocation8 + $0x18] sm:$0xff]
    %v131 = vld [vmem:[#allocation10] sm:$0xff]
    %v132 = vld [vmem:[#allocation10 + $0x8] sm:$0xff]
    %v133 = vld [vmem:[#allocation10 + $0x10] sm:$0xff]
    %v134 = vld [vmem:[#allocation10 + $0x18] sm:$0xff]
    %v135 = vld [vmem:[#allocation11] sm:$0x1]
    %v137 = vperm.slane %v126, 0
    %vm139 = vcmask 261120
    %v141 = vsel %vm139, %v117, 0
    %143 = vmatpush.msra.mxu0 0.0
    %144 = vmatpush.msra.mxu0 0.0
    %145 = vmatpush.msra.mxu0 0.0
    %146 = vmatpush.msra.mxu0 0.0
    %147 = vmatpush.msra.mxu0 0.0
    %148 = vmatpush.msra.mxu0 0.0
    %149 = vmatpush.msra.mxu0 0.0
    %150 = vmatpush.msra.mxu0 0.0
    %151 = vmatpush.msra.mxu0 0.0
    %152 = vmatpush.msra.mxu0 0.0
    %153 = vmatpush.msra.mxu0 0.0
    %154 = vmatpush.msra.mxu0 0.0
    %155 = vmatpush.msra.mxu0 %v121
    %156 = vmatpush.msra.mxu0 %v120
    %157 = vmatpush.msra.mxu0 %v119
    %158 = vmatpush.msra.mxu0 %v118
    %159 = vmatmul.f32.gmra.mxu0 %v141
    %v160 = vpop.f32.mrf.mxu0
    %v161 = vadd.f32 %v137, %v160
    %162 = vdwg.mxu0
    %v164 = vperm.slane %v135, 0
    %166 = vmatpush.msra.mxu0 0.0
    %167 = vmatpush.msra.mxu0 0.0
    %168 = vmatpush.msra.mxu0 0.0
    %169 = vmatpush.msra.mxu0 0.0
    %170 = vmatpush.msra.mxu0 0.0
    %171 = vmatpush.msra.mxu0 0.0
    %172 = vmatpush.msra.mxu0 0.0
    %173 = vmatpush.msra.mxu0 0.0
    %174 = vmatpush.msra.mxu0 0.0
    %175 = vmatpush.msra.mxu0 0.0
    %176 = vmatpush.msra.mxu0 0.0
    %177 = vmatpush.msra.mxu0 0.0
    %178 = vmatpush.msra.mxu0 %v130
    %179 = vmatpush.msra.mxu0 %v129
    %180 = vmatpush.msra.mxu0 %v128
    %181 = vmatpush.msra.mxu0 %v127
    %182 = vmatmul.f32.gmra.mxu0 %v141
    %v183 = vpop.f32.mrf.mxu0
    %v184 = vadd.f32 %v164, %v183
    %185 = vdwg.mxu0
    %v186 = vlaneseq
    %v187 = vand.u32 %v186, 127
    %vm188 = vcmp.ge.s32.totalorder %v187, 64
    %vm189 = vcmp.lt.s32.totalorder %v187, 96
    %vm190 = vmand %vm188, %vm189
    %v191 = vtanh.pop %v161
    %v192 = vxor.u32 %v161, 2147483648
    %v193 = vmul.f32 %v192, 1.442695
    %v194 = vpow.pop %v193
    %v195 = vadd.f32 %v194, 1.0
    %v196 = vrcp.pop %v195
    %v197 = vmul.f32 %v195, %v196
    %v198 = vsub.f32 1.0, %v197
    %v199 = vmul.f32 %v196, %v198
    %v200 = vadd.f32 %v196, %v199
    %vm201 = vweird.f32 %v195
    %vm202 = vweird.f32 %v196
    %vm203 = vmor %vm201, %vm202
    %v204 = vsel %vm203, %v196, %v200
    %v205 = vand.u32 2147483647, %v195
    %vm206 = vcmp.eq.f32.partialorder %v205, 8.507059e+37
    %v207 = vand.u32 %v195, 2147483648
    %v208 = vor.u32 1.1754944e-38, %v207
    %v209 = vsel %vm206, %v208, %v204
    %v210 = vmul.f32 1.0, %v209
    %v211 = vsel %vm190, %v191, %v210
    %v212 = vmul.f32 %v211, 0.0
    %214 = vrot.lane.b32.xlu0 %v211, 64
    %v215 = vpop.permute.xlu0 %214
    %v217 = vmul.f32 %v211, %v215
    %219 = vrot.lane.b32.xlu0 %v217, 32
    %v220 = vpop.permute.xlu0 %219
    %v222 = vadd.f32 %v212, %v220
    %v223 = vtanh.pop %v222
    %225 = vrot.lane.b32.xlu0 %v223, 64
    %v226 = vpop.permute.xlu0 %225
    %v228 = vmul.f32 %v211, %v226
    %230 = vrot.lane.b32.xlu0 %v228, 32
    %v231 = vpop.permute.xlu0 %230
    %v232 = vsel %vm139, %v231, 0
    %234 = vmatpush.msra.mxu0 0.0
    %235 = vmatpush.msra.mxu0 0.0
    %236 = vmatpush.msra.mxu0 0.0
    %237 = vmatpush.msra.mxu0 0.0
    %238 = vmatpush.msra.mxu0 0.0
    %239 = vmatpush.msra.mxu0 0.0
    %240 = vmatpush.msra.mxu0 0.0
    %241 = vmatpush.msra.mxu0 0.0
    %242 = vmatpush.msra.mxu0 0.0
    %243 = vmatpush.msra.mxu0 0.0
    %244 = vmatpush.msra.mxu0 0.0
    %245 = vmatpush.msra.mxu0 0.0
    %246 = vmatpush.msra.mxu0 %v125
    %247 = vmatpush.msra.mxu0 %v124
    %248 = vmatpush.msra.mxu0 %v123
    %249 = vmatpush.msra.mxu0 %v122
    %250 = vmatmul.f32.gmra.mxu0 %v232
    %v251 = vpop.f32.mrf.mxu0
    %v252 = vadd.f32 0.0, %v251
    %253 = vdwg.mxu0
    %v255 = vrot.slane %v252, 7
    %v257 = vadd.f32 %v161, %v255
    %v258 = vtanh.pop %v257
    %v259 = vxor.u32 %v257, 2147483648
    %v260 = vmul.f32 %v259, 1.442695
    %v261 = vpow.pop %v260
    %v262 = vadd.f32 %v261, 1.0
    %v263 = vrcp.pop %v262
    %v264 = vmul.f32 %v262, %v263
    %v265 = vsub.f32 1.0, %v264
    %v266 = vmul.f32 %v263, %v265
    %v267 = vadd.f32 %v263, %v266
    %vm268 = vweird.f32 %v262
    %vm269 = vweird.f32 %v263
    %vm270 = vmor %vm268, %vm269
    %v271 = vsel %vm270, %v263, %v267
    %v272 = vand.u32 2147483647, %v262
    %vm273 = vcmp.eq.f32.partialorder %v272, 8.507059e+37
    %v274 = vand.u32 %v262, 2147483648
    %v275 = vor.u32 1.1754944e-38, %v274
    %v276 = vsel %vm273, %v275, %v271
    %v277 = vmul.f32 1.0, %v276
    %v278 = vsel %vm190, %v258, %v277
    %v280 = vrot.slane %v222, 7
    %v282 = vmul.f32 %v278, %v280
    %284 = vrot.lane.b32.xlu0 %v278, 64
    %v285 = vpop.permute.xlu0 %284
    %v287 = vmul.f32 %v278, %v285
    %289 = vrot.lane.b32.xlu0 %v287, 32
    %v290 = vpop.permute.xlu0 %289
    %v292 = vadd.f32 %v282, %v290
    %v293 = vtanh.pop %v292
    %295 = vrot.lane.b32.xlu0 %v293, 64
    %v296 = vpop.permute.xlu0 %295
    %v298 = vmul.f32 %v278, %v296
    %v300 = vrot.slane %v298, 1
    %301 = vrot.lane.b32.xlu0 %v300, 32
    %v302 = vpop.permute.xlu0 %301
    %v303 = vsel %vm139, %v302, 0
    %305 = vmatpush.msra.mxu0 0.0
    %306 = vmatpush.msra.mxu0 0.0
    %307 = vmatpush.msra.mxu0 0.0
    %308 = vmatpush.msra.mxu0 0.0
    %309 = vmatpush.msra.mxu0 0.0
    %310 = vmatpush.msra.mxu0 0.0
    %311 = vmatpush.msra.mxu0 0.0
    %312 = vmatpush.msra.mxu0 0.0
    %313 = vmatpush.msra.mxu0 0.0
    %314 = vmatpush.msra.mxu0 0.0
    %315 = vmatpush.msra.mxu0 0.0
    %316 = vmatpush.msra.mxu0 0.0
    %317 = vmatpush.msra.mxu0 %v125
    %318 = vmatpush.msra.mxu0 %v124
    %319 = vmatpush.msra.mxu0 %v123
    %320 = vmatpush.msra.mxu0 %v122
    %321 = vmatmul.f32.gmra.mxu0 %v303
    %v322 = vpop.f32.mrf.mxu0
    %v323 = vadd.f32 0.0, %v322
    %324 = vdwg.mxu0
    %v326 = vrot.slane %v323, 6
    %v328 = vadd.f32 %v161, %v326
    %v329 = vtanh.pop %v328
    %v330 = vxor.u32 %v328, 2147483648
    %v331 = vmul.f32 %v330, 1.442695
    %v332 = vpow.pop %v331
    %v333 = vadd.f32 %v332, 1.0
    %v334 = vrcp.pop %v333
    %v335 = vmul.f32 %v333, %v334
    %v336 = vsub.f32 1.0, %v335
    %v337 = vmul.f32 %v334, %v336
    %v338 = vadd.f32 %v334, %v337
    %vm339 = vweird.f32 %v333
    %vm340 = vweird.f32 %v334
    %vm341 = vmor %vm339, %vm340
    %v342 = vsel %vm341, %v334, %v338
    %v343 = vand.u32 2147483647, %v333
    %vm344 = vcmp.eq.f32.partialorder %v343, 8.507059e+37
    %v345 = vand.u32 %v333, 2147483648
    %v346 = vor.u32 1.1754944e-38, %v345
    %v347 = vsel %vm344, %v346, %v342
    %v348 = vmul.f32 1.0, %v347
    %v349 = vsel %vm190, %v329, %v348
    %v351 = vrot.slane %v292, 7
    %v353 = vmul.f32 %v349, %v351
    %355 = vrot.lane.b32.xlu0 %v349, 64
    %v356 = vpop.permute.xlu0 %355
    %v358 = vmul.f32 %v349, %v356
    %360 = vrot.lane.b32.xlu0 %v358, 32
    %v361 = vpop.permute.xlu0 %360
    %v363 = vadd.f32 %v353, %v361
    %v364 = vtanh.pop %v363
    %366 = vrot.lane.b32.xlu0 %v364, 64
    %v367 = vpop.permute.xlu0 %366
    %v369 = vmul.f32 %v349, %v367
    %v371 = vrot.slane %v369, 2
    %372 = vrot.lane.b32.xlu0 %v371, 32
    %v373 = vpop.permute.xlu0 %372
    %v374 = vsel %vm139, %v373, 0
    %376 = vmatpush.msra.mxu0 0.0
    %377 = vmatpush.msra.mxu0 0.0
    %378 = vmatpush.msra.mxu0 0.0
    %379 = vmatpush.msra.mxu0 0.0
    %380 = vmatpush.msra.mxu0 0.0
    %381 = vmatpush.msra.mxu0 0.0
    %382 = vmatpush.msra.mxu0 0.0
    %383 = vmatpush.msra.mxu0 0.0
    %384 = vmatpush.msra.mxu0 0.0
    %385 = vmatpush.msra.mxu0 0.0
    %386 = vmatpush.msra.mxu0 0.0
    %387 = vmatpush.msra.mxu0 0.0
    %388 = vmatpush.msra.mxu0 %v125
    %389 = vmatpush.msra.mxu0 %v124
    %390 = vmatpush.msra.mxu0 %v123
    %391 = vmatpush.msra.mxu0 %v122
    %392 = vmatmul.f32.gmra.mxu0 %v374
    %v393 = vpop.f32.mrf.mxu0
    %v394 = vadd.f32 0.0, %v393
    %395 = vdwg.mxu0
    %v397 = vrot.slane %v394, 5
    %v399 = vadd.f32 %v161, %v397
    %v400 = vtanh.pop %v399
    %v401 = vxor.u32 %v399, 2147483648
    %v402 = vmul.f32 %v401, 1.442695
    %v403 = vpow.pop %v402
    %v404 = vadd.f32 %v403, 1.0
    %v405 = vrcp.pop %v404
    %v406 = vmul.f32 %v404, %v405
    %v407 = vsub.f32 1.0, %v406
    %v408 = vmul.f32 %v405, %v407
    %v409 = vadd.f32 %v405, %v408
    %vm410 = vweird.f32 %v404
    %vm411 = vweird.f32 %v405
    %vm412 = vmor %vm410, %vm411
    %v413 = vsel %vm412, %v405, %v409
    %v414 = vand.u32 2147483647, %v404
    %vm415 = vcmp.eq.f32.partialorder %v414, 8.507059e+37
    %v416 = vand.u32 %v404, 2147483648
    %v417 = vor.u32 1.1754944e-38, %v416
    %v418 = vsel %vm415, %v417, %v413
    %v419 = vmul.f32 1.0, %v418
    %v420 = vsel %vm190, %v400, %v419
    %v422 = vrot.slane %v363, 7
    %v424 = vmul.f32 %v420, %v422
    %426 = vrot.lane.b32.xlu0 %v420, 64
    %v427 = vpop.permute.xlu0 %426
    %v429 = vmul.f32 %v420, %v427
    %431 = vrot.lane.b32.xlu0 %v429, 32
    %v432 = vpop.permute.xlu0 %431
    %v434 = vadd.f32 %v424, %v432
    %v435 = vtanh.pop %v434
    %437 = vrot.lane.b32.xlu0 %v435, 64
    %v438 = vpop.permute.xlu0 %437
    %v440 = vmul.f32 %v420, %v438
    %v442 = vrot.slane %v440, 3
    %443 = vrot.lane.b32.xlu0 %v442, 32
    %v444 = vpop.permute.xlu0 %443
    %v445 = vsel %vm139, %v444, 0
    %447 = vmatpush.msra.mxu0 0.0
    %448 = vmatpush.msra.mxu0 0.0
    %449 = vmatpush.msra.mxu0 0.0
    %450 = vmatpush.msra.mxu0 0.0
    %451 = vmatpush.msra.mxu0 0.0
    %452 = vmatpush.msra.mxu0 0.0
    %453 = vmatpush.msra.mxu0 0.0
    %454 = vmatpush.msra.mxu0 0.0
    %455 = vmatpush.msra.mxu0 0.0
    %456 = vmatpush.msra.mxu0 0.0
    %457 = vmatpush.msra.mxu0 0.0
    %458 = vmatpush.msra.mxu0 0.0
    %459 = vmatpush.msra.mxu0 %v125
    %460 = vmatpush.msra.mxu0 %v124
    %461 = vmatpush.msra.mxu0 %v123
    %462 = vmatpush.msra.mxu0 %v122
    %463 = vmatmul.f32.gmra.mxu0 %v445
    %v464 = vpop.f32.mrf.mxu0
    %v465 = vadd.f32 0.0, %v464
    %466 = vdwg.mxu0
    %v468 = vrot.slane %v465, 4
    %v470 = vadd.f32 %v161, %v468
    %v471 = vtanh.pop %v470
    %v472 = vxor.u32 %v470, 2147483648
    %v473 = vmul.f32 %v472, 1.442695
    %v474 = vpow.pop %v473
    %v475 = vadd.f32 %v474, 1.0
    %v476 = vrcp.pop %v475
    %v477 = vmul.f32 %v475, %v476
    %v478 = vsub.f32 1.0, %v477
    %v479 = vmul.f32 %v476, %v478
    %v480 = vadd.f32 %v476, %v479
    %vm481 = vweird.f32 %v475
    %vm482 = vweird.f32 %v476
    %vm483 = vmor %vm481, %vm482
    %v484 = vsel %vm483, %v476, %v480
    %v485 = vand.u32 2147483647, %v475
    %vm486 = vcmp.eq.f32.partialorder %v485, 8.507059e+37
    %v487 = vand.u32 %v475, 2147483648
    %v488 = vor.u32 1.1754944e-38, %v487
    %v489 = vsel %vm486, %v488, %v484
    %v490 = vmul.f32 1.0, %v489
    %v491 = vsel %vm190, %v471, %v490
    %v493 = vrot.slane %v434, 7
    %v495 = vmul.f32 %v491, %v493
    %497 = vrot.lane.b32.xlu0 %v491, 64
    %v498 = vpop.permute.xlu0 %497
    %v500 = vmul.f32 %v491, %v498
    %502 = vrot.lane.b32.xlu0 %v500, 32
    %v503 = vpop.permute.xlu0 %502
    %v505 = vadd.f32 %v495, %v503
    %v506 = vtanh.pop %v505
    %508 = vrot.lane.b32.xlu0 %v506, 64
    %v509 = vpop.permute.xlu0 %508
    %v511 = vmul.f32 %v491, %v509
    %v513 = vrot.slane %v511, 4
    %514 = vrot.lane.b32.xlu0 %v513, 32
    %v515 = vpop.permute.xlu0 %514
    %v516 = vsel %vm139, %v515, 0
    %518 = vmatpush.msra.mxu0 0.0
    %519 = vmatpush.msra.mxu0 0.0
    %520 = vmatpush.msra.mxu0 0.0
    %521 = vmatpush.msra.mxu0 0.0
    %522 = vmatpush.msra.mxu0 0.0
    %523 = vmatpush.msra.mxu0 0.0
    %524 = vmatpush.msra.mxu0 0.0
    %525 = vmatpush.msra.mxu0 0.0
    %526 = vmatpush.msra.mxu0 0.0
    %527 = vmatpush.msra.mxu0 0.0
    %528 = vmatpush.msra.mxu0 0.0
    %529 = vmatpush.msra.mxu0 0.0
    %530 = vmatpush.msra.mxu0 %v125
    %531 = vmatpush.msra.mxu0 %v124
    %532 = vmatpush.msra.mxu0 %v123
    %533 = vmatpush.msra.mxu0 %v122
    %534 = vmatmul.f32.gmra.mxu0 %v516
    %v535 = vpop.f32.mrf.mxu0
    %v536 = vadd.f32 0.0, %v535
    %537 = vdwg.mxu0
    %v539 = vrot.slane %v536, 3
    %v541 = vadd.f32 %v161, %v539
    %v542 = vtanh.pop %v541
    %v543 = vxor.u32 %v541, 2147483648
    %v544 = vmul.f32 %v543, 1.442695
    %v545 = vpow.pop %v544
    %v546 = vadd.f32 %v545, 1.0
    %v547 = vrcp.pop %v546
    %v548 = vmul.f32 %v546, %v547
    %v549 = vsub.f32 1.0, %v548
    %v550 = vmul.f32 %v547, %v549
    %v551 = vadd.f32 %v547, %v550
    %vm552 = vweird.f32 %v546
    %vm553 = vweird.f32 %v547
    %vm554 = vmor %vm552, %vm553
    %v555 = vsel %vm554, %v547, %v551
    %v556 = vand.u32 2147483647, %v546
    %vm557 = vcmp.eq.f32.partialorder %v556, 8.507059e+37
    %v558 = vand.u32 %v546, 2147483648
    %v559 = vor.u32 1.1754944e-38, %v558
    %v560 = vsel %vm557, %v559, %v555
    %v561 = vmul.f32 1.0, %v560
    %v562 = vsel %vm190, %v542, %v561
    %v564 = vrot.slane %v505, 7
    %v566 = vmul.f32 %v562, %v564
    %568 = vrot.lane.b32.xlu0 %v562, 64
    %v569 = vpop.permute.xlu0 %568
    %v571 = vmul.f32 %v562, %v569
    %573 = vrot.lane.b32.xlu0 %v571, 32
    %v574 = vpop.permute.xlu0 %573
    %v576 = vadd.f32 %v566, %v574
    %v577 = vtanh.pop %v576
    %579 = vrot.lane.b32.xlu0 %v577, 64
    %v580 = vpop.permute.xlu0 %579
    %v582 = vmul.f32 %v562, %v580
    %v584 = vrot.slane %v582, 5
    %585 = vrot.lane.b32.xlu0 %v584, 32
    %v586 = vpop.permute.xlu0 %585
    %v587 = vsel %vm139, %v586, 0
    %589 = vmatpush.msra.mxu0 0.0
    %590 = vmatpush.msra.mxu0 0.0
    %591 = vmatpush.msra.mxu0 0.0
    %592 = vmatpush.msra.mxu0 0.0
    %593 = vmatpush.msra.mxu0 0.0
    %594 = vmatpush.msra.mxu0 0.0
    %595 = vmatpush.msra.mxu0 0.0
    %596 = vmatpush.msra.mxu0 0.0
    %597 = vmatpush.msra.mxu0 0.0
    %598 = vmatpush.msra.mxu0 0.0
    %599 = vmatpush.msra.mxu0 0.0
    %600 = vmatpush.msra.mxu0 0.0
    %601 = vmatpush.msra.mxu0 %v125
    %602 = vmatpush.msra.mxu0 %v124
    %603 = vmatpush.msra.mxu0 %v123
    %604 = vmatpush.msra.mxu0 %v122
    %605 = vmatmul.f32.gmra.mxu0 %v587
    %v606 = vpop.f32.mrf.mxu0
    %v607 = vadd.f32 0.0, %v606
    %608 = vdwg.mxu0
    %v610 = vrot.slane %v607, 2
    %v612 = vadd.f32 %v161, %v610
    %v613 = vtanh.pop %v612
    %v614 = vxor.u32 %v612, 2147483648
    %v615 = vmul.f32 %v614, 1.442695
    %v616 = vpow.pop %v615
    %v617 = vadd.f32 %v616, 1.0
    %v618 = vrcp.pop %v617
    %v619 = vmul.f32 %v617, %v618
    %v620 = vsub.f32 1.0, %v619
    %v621 = vmul.f32 %v618, %v620
    %v622 = vadd.f32 %v618, %v621
    %vm623 = vweird.f32 %v617
    %vm624 = vweird.f32 %v618
    %vm625 = vmor %vm623, %vm624
    %v626 = vsel %vm625, %v618, %v622
    %v627 = vand.u32 2147483647, %v617
    %vm628 = vcmp.eq.f32.partialorder %v627, 8.507059e+37
    %v629 = vand.u32 %v617, 2147483648
    %v630 = vor.u32 1.1754944e-38, %v629
    %v631 = vsel %vm628, %v630, %v626
    %v632 = vmul.f32 1.0, %v631
    %v633 = vsel %vm190, %v613, %v632
    %v635 = vrot.slane %v576, 7
    %v637 = vmul.f32 %v633, %v635
    %639 = vrot.lane.b32.xlu0 %v633, 64
    %v640 = vpop.permute.xlu0 %639
    %v642 = vmul.f32 %v633, %v640
    %644 = vrot.lane.b32.xlu0 %v642, 32
    %v645 = vpop.permute.xlu0 %644
    %v647 = vadd.f32 %v637, %v645
    %v648 = vtanh.pop %v647
    %650 = vrot.lane.b32.xlu0 %v648, 64
    %v651 = vpop.permute.xlu0 %650
    %v653 = vmul.f32 %v633, %v651
    %v655 = vrot.slane %v653, 6
    %656 = vrot.lane.b32.xlu0 %v655, 32
    %v657 = vpop.permute.xlu0 %656
    %v658 = vsel %vm139, %v657, 0
    %660 = vmatpush.msra.mxu0 0.0
    %661 = vmatpush.msra.mxu0 0.0
    %662 = vmatpush.msra.mxu0 0.0
    %663 = vmatpush.msra.mxu0 0.0
    %664 = vmatpush.msra.mxu0 0.0
    %665 = vmatpush.msra.mxu0 0.0
    %666 = vmatpush.msra.mxu0 0.0
    %667 = vmatpush.msra.mxu0 0.0
    %668 = vmatpush.msra.mxu0 0.0
    %669 = vmatpush.msra.mxu0 0.0
    %670 = vmatpush.msra.mxu0 0.0
    %671 = vmatpush.msra.mxu0 0.0
    %672 = vmatpush.msra.mxu0 %v125
    %673 = vmatpush.msra.mxu0 %v124
    %674 = vmatpush.msra.mxu0 %v123
    %675 = vmatpush.msra.mxu0 %v122
    %676 = vmatmul.f32.gmra.mxu0 %v658
    %v677 = vpop.f32.mrf.mxu0
    %v678 = vadd.f32 0.0, %v677
    %679 = vdwg.mxu0
    %v681 = vrot.slane %v678, 1
    %v683 = vadd.f32 %v161, %v681
    %v684 = vtanh.pop %v683
    %v685 = vxor.u32 %v683, 2147483648
    %v686 = vmul.f32 %v685, 1.442695
    %v687 = vpow.pop %v686
    %v688 = vadd.f32 %v687, 1.0
    %v689 = vrcp.pop %v688
    %v690 = vmul.f32 %v688, %v689
    %v691 = vsub.f32 1.0, %v690
    %v692 = vmul.f32 %v689, %v691
    %v693 = vadd.f32 %v689, %v692
    %vm694 = vweird.f32 %v688
    %vm695 = vweird.f32 %v689
    %vm696 = vmor %vm694, %vm695
    %v697 = vsel %vm696, %v689, %v693
    %v698 = vand.u32 2147483647, %v688
    %vm699 = vcmp.eq.f32.partialorder %v698, 8.507059e+37
    %v700 = vand.u32 %v688, 2147483648
    %v701 = vor.u32 1.1754944e-38, %v700
    %v702 = vsel %vm699, %v701, %v697
    %v703 = vmul.f32 1.0, %v702
    %v704 = vsel %vm190, %v684, %v703
    %v706 = vrot.slane %v647, 7
    %v708 = vmul.f32 %v704, %v706
    %710 = vrot.lane.b32.xlu0 %v704, 64
    %v711 = vpop.permute.xlu0 %710
    %v713 = vmul.f32 %v704, %v711
    %715 = vrot.lane.b32.xlu0 %v713, 32
    %v716 = vpop.permute.xlu0 %715
    %v718 = vadd.f32 %v708, %v716
    %v719 = vtanh.pop %v718
    %721 = vrot.lane.b32.xlu0 %v719, 64
    %v722 = vpop.permute.xlu0 %721
    %v724 = vmul.f32 %v704, %v722
    %v726 = vrot.slane %v724, 7
    %727 = vrot.lane.b32.xlu0 %v726, 32
    %v728 = vpop.permute.xlu0 %727
    %v729 = vsel %vm139, %v728, 0
    %731 = vmatpush.msra.mxu0 0.0
    %732 = vmatpush.msra.mxu0 0.0
    %733 = vmatpush.msra.mxu0 0.0
    %734 = vmatpush.msra.mxu0 0.0
    %735 = vmatpush.msra.mxu0 0.0
    %736 = vmatpush.msra.mxu0 0.0
    %737 = vmatpush.msra.mxu0 0.0
    %738 = vmatpush.msra.mxu0 0.0
    %739 = vmatpush.msra.mxu0 0.0
    %740 = vmatpush.msra.mxu0 0.0
    %741 = vmatpush.msra.mxu0 0.0
    %742 = vmatpush.msra.mxu0 0.0
    %743 = vmatpush.msra.mxu0 %v130
    %744 = vmatpush.msra.mxu0 %v129
    %745 = vmatpush.msra.mxu0 %v128
    %746 = vmatpush.msra.mxu0 %v127
    %747 = vmatmul.f32.gmra.mxu0 %v729
    %v748 = vpop.f32.mrf.mxu0
    %v749 = vadd.f32 %v135, %v748
    %750 = vdwg.mxu0
    %v751 = vtanh.pop %v749
    %v752 = vxor.u32 %v749, 2147483648
    %v753 = vmul.f32 %v752, 1.442695
    %v754 = vpow.pop %v753
    %v755 = vadd.f32 %v754, 1.0
    %v756 = vrcp.pop %v755
    %v757 = vmul.f32 %v755, %v756
    %v758 = vsub.f32 1.0, %v757
    %v759 = vmul.f32 %v756, %v758
    %v760 = vadd.f32 %v756, %v759
    %vm761 = vweird.f32 %v755
    %vm762 = vweird.f32 %v756
    %vm763 = vmor %vm761, %vm762
    %v764 = vsel %vm763, %v756, %v760
    %v765 = vand.u32 2147483647, %v755
    %vm766 = vcmp.eq.f32.partialorder %v765, 8.507059e+37
    %v767 = vand.u32 %v755, 2147483648
    %v768 = vor.u32 1.1754944e-38, %v767
    %v769 = vsel %vm766, %v768, %v764
    %v770 = vmul.f32 1.0, %v769
    %v771 = vsel %vm190, %v751, %v770
    %v772 = vmul.f32 %v771, 0.0
    %774 = vrot.lane.b32.xlu0 %v771, 64
    %v775 = vpop.permute.xlu0 %774
    %v777 = vmul.f32 %v771, %v775
    %779 = vrot.lane.b32.xlu0 %v777, 32
    %v780 = vpop.permute.xlu0 %779
    %v782 = vadd.f32 %v772, %v780
    %v783 = vtanh.pop %v782
    %785 = vrot.lane.b32.xlu0 %v783, 64
    %v786 = vpop.permute.xlu0 %785
    %v788 = vmul.f32 %v771, %v786
    %790 = vrot.lane.b32.xlu0 %v788, 32
    %v791 = vpop.permute.xlu0 %790
    %vm793 = vcmask 253952
    %794 = vst.msk [vmem:[#allocation13 + $0x7] sm:$0x1] %vm793, %v791
    %v795 = vsel %vm139, %v791, 0
    %797 = vmatpush.msra.mxu0 0.0
    %798 = vmatpush.msra.mxu0 0.0
    %799 = vmatpush.msra.mxu0 0.0
    %800 = vmatpush.msra.mxu0 0.0
    %801 = vmatpush.msra.mxu0 0.0
    %802 = vmatpush.msra.mxu0 0.0
    %803 = vmatpush.msra.mxu0 0.0
    %804 = vmatpush.msra.mxu0 0.0
    %805 = vmatpush.msra.mxu0 0.0
    %806 = vmatpush.msra.mxu0 0.0
    %807 = vmatpush.msra.mxu0 0.0
    %808 = vmatpush.msra.mxu0 0.0
    %809 = vmatpush.msra.mxu0 %v134
    %810 = vmatpush.msra.mxu0 %v133
    %811 = vmatpush.msra.mxu0 %v132
    %812 = vmatpush.msra.mxu0 %v131
    %813 = vmatmul.f32.gmra.mxu0 %v795
    %v814 = vpop.f32.mrf.mxu0
    %v815 = vadd.f32 0.0, %v814
    %816 = vdwg.mxu0
    %v818 = vrot.slane %v815, 1
    %v820 = vadd.f32 %v184, %v818
    %v821 = vtanh.pop %v820
    %v822 = vxor.u32 %v820, 2147483648
    %v823 = vmul.f32 %v822, 1.442695
    %v824 = vpow.pop %v823
    %v825 = vadd.f32 %v824, 1.0
    %v826 = vrcp.pop %v825
    %v827 = vmul.f32 %v825, %v826
    %v828 = vsub.f32 1.0, %v827
    %v829 = vmul.f32 %v826, %v828
    %v830 = vadd.f32 %v826, %v829
    %vm831 = vweird.f32 %v825
    %vm832 = vweird.f32 %v826
    %vm833 = vmor %vm831, %vm832
    %v834 = vsel %vm833, %v826, %v830
    %v835 = vand.u32 2147483647, %v825
    %vm836 = vcmp.eq.f32.partialorder %v835, 8.507059e+37
    %v837 = vand.u32 %v825, 2147483648
    %v838 = vor.u32 1.1754944e-38, %v837
    %v839 = vsel %vm836, %v838, %v834
    %v840 = vmul.f32 1.0, %v839
    %v841 = vsel %vm190, %v821, %v840
    %v843 = vrot.slane %v782, 1
    %v845 = vmul.f32 %v841, %v843
    %847 = vrot.lane.b32.xlu0 %v841, 64
    %v848 = vpop.permute.xlu0 %847
    %v850 = vmul.f32 %v841, %v848
    %852 = vrot.lane.b32.xlu0 %v850, 32
    %v853 = vpop.permute.xlu0 %852
    %v855 = vadd.f32 %v845, %v853
    %v856 = vtanh.pop %v855
    %858 = vrot.lane.b32.xlu0 %v856, 64
    %v859 = vpop.permute.xlu0 %858
    %v861 = vmul.f32 %v841, %v859
    %863 = vrot.lane.b32.xlu0 %v861, 32
    %v864 = vpop.permute.xlu0 %863
    %vm866 = vcmask 261127
    %867 = vst.msk [vmem:[#allocation13 - $0x1] sm:$0x80] %vm866, %v864
    %v868 = vrot.slane %v861, 7
    %869 = vrot.lane.b32.xlu0 %v868, 32
    %v870 = vpop.permute.xlu0 %869
    %v871 = vsel %vm139, %v870, 0
    %873 = vmatpush.msra.mxu0 0.0
    %874 = vmatpush.msra.mxu0 0.0
    %875 = vmatpush.msra.mxu0 0.0
    %876 = vmatpush.msra.mxu0 0.0
    %877 = vmatpush.msra.mxu0 0.0
    %878 = vmatpush.msra.mxu0 0.0
    %879 = vmatpush.msra.mxu0 0.0
    %880 = vmatpush.msra.mxu0 0.0
    %881 = vmatpush.msra.mxu0 0.0
    %882 = vmatpush.msra.mxu0 0.0
    %883 = vmatpush.msra.mxu0 0.0
    %884 = vmatpush.msra.mxu0 0.0
    %885 = vmatpush.msra.mxu0 %v134
    %886 = vmatpush.msra.mxu0 %v133
    %887 = vmatpush.msra.mxu0 %v132
    %888 = vmatpush.msra.mxu0 %v131
    %889 = vmatmul.f32.gmra.mxu0 %v871
    %v890 = vpop.f32.mrf.mxu0
    %v891 = vadd.f32 0.0, %v890
    %892 = vdwg.mxu0
    %v894 = vrot.slane %v891, 2
    %v896 = vadd.f32 %v184, %v894
    %v897 = vtanh.pop %v896
    %v898 = vxor.u32 %v896, 2147483648
    %v899 = vmul.f32 %v898, 1.442695
    %v900 = vpow.pop %v899
    %v901 = vadd.f32 %v900, 1.0
    %v902 = vrcp.pop %v901
    %v903 = vmul.f32 %v901, %v902
    %v904 = vsub.f32 1.0, %v903
    %v905 = vmul.f32 %v902, %v904
    %v906 = vadd.f32 %v902, %v905
    %vm907 = vweird.f32 %v901
    %vm908 = vweird.f32 %v902
    %vm909 = vmor %vm907, %vm908
    %v910 = vsel %vm909, %v902, %v906
    %v911 = vand.u32 2147483647, %v901
    %vm912 = vcmp.eq.f32.partialorder %v911, 8.507059e+37
    %v913 = vand.u32 %v901, 2147483648
    %v914 = vor.u32 1.1754944e-38, %v913
    %v915 = vsel %vm912, %v914, %v910
    %v916 = vmul.f32 1.0, %v915
    %v917 = vsel %vm190, %v897, %v916
    %v919 = vrot.slane %v855, 1
    %v921 = vmul.f32 %v917, %v919
    %923 = vrot.lane.b32.xlu0 %v917, 64
    %v924 = vpop.permute.xlu0 %923
    %v926 = vmul.f32 %v917, %v924
    %928 = vrot.lane.b32.xlu0 %v926, 32
    %v929 = vpop.permute.xlu0 %928
    %v931 = vadd.f32 %v921, %v929
    %v932 = vtanh.pop %v931
    %934 = vrot.lane.b32.xlu0 %v932, 64
    %v935 = vpop.permute.xlu0 %934
    %v937 = vmul.f32 %v917, %v935
    %939 = vrot.lane.b32.xlu0 %v937, 32
    %v940 = vpop.permute.xlu0 %939
    %vm942 = vcmask 260102
    %943 = vst.msk [vmem:[#allocation13 - $0x1] sm:$0x40] %vm942, %v940
    %v944 = vrot.slane %v937, 6
    %945 = vrot.lane.b32.xlu0 %v944, 32
    %v946 = vpop.permute.xlu0 %945
    %v947 = vsel %vm139, %v946, 0
    %949 = vmatpush.msra.mxu0 0.0
    %950 = vmatpush.msra.mxu0 0.0
    %951 = vmatpush.msra.mxu0 0.0
    %952 = vmatpush.msra.mxu0 0.0
    %953 = vmatpush.msra.mxu0 0.0
    %954 = vmatpush.msra.mxu0 0.0
    %955 = vmatpush.msra.mxu0 0.0
    %956 = vmatpush.msra.mxu0 0.0
    %957 = vmatpush.msra.mxu0 0.0
    %958 = vmatpush.msra.mxu0 0.0
    %959 = vmatpush.msra.mxu0 0.0
    %960 = vmatpush.msra.mxu0 0.0
    %961 = vmatpush.msra.mxu0 %v134
    %962 = vmatpush.msra.mxu0 %v133
    %963 = vmatpush.msra.mxu0 %v132
    %964 = vmatpush.msra.mxu0 %v131
    %965 = vmatmul.f32.gmra.mxu0 %v947
    %v966 = vpop.f32.mrf.mxu0
    %v967 = vadd.f32 0.0, %v966
    %968 = vdwg.mxu0
    %v970 = vrot.slane %v967, 3
    %v972 = vadd.f32 %v184, %v970
    %v973 = vtanh.pop %v972
    %v974 = vxor.u32 %v972, 2147483648
    %v975 = vmul.f32 %v974, 1.442695
    %v976 = vpow.pop %v975
    %v977 = vadd.f32 %v976, 1.0
    %v978 = vrcp.pop %v977
    %v979 = vmul.f32 %v977, %v978
    %v980 = vsub.f32 1.0, %v979
    %v981 = vmul.f32 %v978, %v980
    %v982 = vadd.f32 %v978, %v981
    %vm983 = vweird.f32 %v977
    %vm984 = vweird.f32 %v978
    %vm985 = vmor %vm983, %vm984
    %v986 = vsel %vm985, %v978, %v982
    %v987 = vand.u32 2147483647, %v977
    %vm988 = vcmp.eq.f32.partialorder %v987, 8.507059e+37
    %v989 = vand.u32 %v977, 2147483648
    %v990 = vor.u32 1.1754944e-38, %v989
    %v991 = vsel %vm988, %v990, %v986
    %v992 = vmul.f32 1.0, %v991
    %v993 = vsel %vm190, %v973, %v992
    %v995 = vrot.slane %v931, 1
    %v997 = vmul.f32 %v993, %v995
    %999 = vrot.lane.b32.xlu0 %v993, 64
    %v1000 = vpop.permute.xlu0 %999
    %v1002 = vmul.f32 %v993, %v1000
    %1004 = vrot.lane.b32.xlu0 %v1002, 32
    %v1005 = vpop.permute.xlu0 %1004
    %v1007 = vadd.f32 %v997, %v1005
    %v1008 = vtanh.pop %v1007
    %1010 = vrot.lane.b32.xlu0 %v1008, 64
    %v1011 = vpop.permute.xlu0 %1010
    %v1013 = vmul.f32 %v993, %v1011
    %1015 = vrot.lane.b32.xlu0 %v1013, 32
    %v1016 = vpop.permute.xlu0 %1015
    %vm1018 = vcmask 259077
    %1019 = vst.msk [vmem:[#allocation13 - $0x1] sm:$0x20] %vm1018, %v1016
    %v1020 = vrot.slane %v1013, 5
    %1021 = vrot.lane.b32.xlu0 %v1020, 32
    %v1022 = vpop.permute.xlu0 %1021
    %v1023 = vsel %vm139, %v1022, 0
    %1025 = vmatpush.msra.mxu0 0.0
    %1026 = vmatpush.msra.mxu0 0.0
    %1027 = vmatpush.msra.mxu0 0.0
    %1028 = vmatpush.msra.mxu0 0.0
    %1029 = vmatpush.msra.mxu0 0.0
    %1030 = vmatpush.msra.mxu0 0.0
    %1031 = vmatpush.msra.mxu0 0.0
    %1032 = vmatpush.msra.mxu0 0.0
    %1033 = vmatpush.msra.mxu0 0.0
    %1034 = vmatpush.msra.mxu0 0.0
    %1035 = vmatpush.msra.mxu0 0.0
    %1036 = vmatpush.msra.mxu0 0.0
    %1037 = vmatpush.msra.mxu0 %v134
    %1038 = vmatpush.msra.mxu0 %v133
    %1039 = vmatpush.msra.mxu0 %v132
    %1040 = vmatpush.msra.mxu0 %v131
    %1041 = vmatmul.f32.gmra.mxu0 %v1023
    %v1042 = vpop.f32.mrf.mxu0
    %v1043 = vadd.f32 0.0, %v1042
    %1044 = vdwg.mxu0
    %v1046 = vrot.slane %v1043, 4
    %v1048 = vadd.f32 %v184, %v1046
    %v1049 = vtanh.pop %v1048
    %v1050 = vxor.u32 %v1048, 2147483648
    %v1051 = vmul.f32 %v1050, 1.442695
    %v1052 = vpow.pop %v1051
    %v1053 = vadd.f32 %v1052, 1.0
    %v1054 = vrcp.pop %v1053
    %v1055 = vmul.f32 %v1053, %v1054
    %v1056 = vsub.f32 1.0, %v1055
    %v1057 = vmul.f32 %v1054, %v1056
    %v1058 = vadd.f32 %v1054, %v1057
    %vm1059 = vweird.f32 %v1053
    %vm1060 = vweird.f32 %v1054
    %vm1061 = vmor %vm1059, %vm1060
    %v1062 = vsel %vm1061, %v1054, %v1058
    %v1063 = vand.u32 2147483647, %v1053
    %vm1064 = vcmp.eq.f32.partialorder %v1063, 8.507059e+37
    %v1065 = vand.u32 %v1053, 2147483648
    %v1066 = vor.u32 1.1754944e-38, %v1065
    %v1067 = vsel %vm1064, %v1066, %v1062
    %v1068 = vmul.f32 1.0, %v1067
    %v1069 = vsel %vm190, %v1049, %v1068
    %v1071 = vrot.slane %v1007, 1
    %v1073 = vmul.f32 %v1069, %v1071
    %1075 = vrot.lane.b32.xlu0 %v1069, 64
    %v1076 = vpop.permute.xlu0 %1075
    %v1078 = vmul.f32 %v1069, %v1076
    %1080 = vrot.lane.b32.xlu0 %v1078, 32
    %v1081 = vpop.permute.xlu0 %1080
    %v1083 = vadd.f32 %v1073, %v1081
    %v1084 = vtanh.pop %v1083
    %1086 = vrot.lane.b32.xlu0 %v1084, 64
    %v1087 = vpop.permute.xlu0 %1086
    %v1089 = vmul.f32 %v1069, %v1087
    %1091 = vrot.lane.b32.xlu0 %v1089, 32
    %v1092 = vpop.permute.xlu0 %1091
    %vm1094 = vcmask 258052
    %1095 = vst.msk [vmem:[#allocation13 - $0x1] sm:$0x10] %vm1094, %v1092
    %v1096 = vrot.slane %v1089, 4
    %1097 = vrot.lane.b32.xlu0 %v1096, 32
    %v1098 = vpop.permute.xlu0 %1097
    %v1099 = vsel %vm139, %v1098, 0
    %1101 = vmatpush.msra.mxu0 0.0
    %1102 = vmatpush.msra.mxu0 0.0
    %1103 = vmatpush.msra.mxu0 0.0
    %1104 = vmatpush.msra.mxu0 0.0
    %1105 = vmatpush.msra.mxu0 0.0
    %1106 = vmatpush.msra.mxu0 0.0
    %1107 = vmatpush.msra.mxu0 0.0
    %1108 = vmatpush.msra.mxu0 0.0
    %1109 = vmatpush.msra.mxu0 0.0
    %1110 = vmatpush.msra.mxu0 0.0
    %1111 = vmatpush.msra.mxu0 0.0
    %1112 = vmatpush.msra.mxu0 0.0
    %1113 = vmatpush.msra.mxu0 %v134
    %1114 = vmatpush.msra.mxu0 %v133
    %1115 = vmatpush.msra.mxu0 %v132
    %1116 = vmatpush.msra.mxu0 %v131
    %1117 = vmatmul.f32.gmra.mxu0 %v1099
    %v1118 = vpop.f32.mrf.mxu0
    %v1119 = vadd.f32 0.0, %v1118
    %1120 = vdwg.mxu0
    %v1122 = vrot.slane %v1119, 5
    %v1124 = vadd.f32 %v184, %v1122
    %v1125 = vtanh.pop %v1124
    %v1126 = vxor.u32 %v1124, 2147483648
    %v1127 = vmul.f32 %v1126, 1.442695
    %v1128 = vpow.pop %v1127
    %v1129 = vadd.f32 %v1128, 1.0
    %v1130 = vrcp.pop %v1129
    %v1131 = vmul.f32 %v1129, %v1130
    %v1132 = vsub.f32 1.0, %v1131
    %v1133 = vmul.f32 %v1130, %v1132
    %v1134 = vadd.f32 %v1130, %v1133
    %vm1135 = vweird.f32 %v1129
    %vm1136 = vweird.f32 %v1130
    %vm1137 = vmor %vm1135, %vm1136
    %v1138 = vsel %vm1137, %v1130, %v1134
    %v1139 = vand.u32 2147483647, %v1129
    %vm1140 = vcmp.eq.f32.partialorder %v1139, 8.507059e+37
    %v1141 = vand.u32 %v1129, 2147483648
    %v1142 = vor.u32 1.1754944e-38, %v1141
    %v1143 = vsel %vm1140, %v1142, %v1138
    %v1144 = vmul.f32 1.0, %v1143
    %v1145 = vsel %vm190, %v1125, %v1144
    %v1147 = vrot.slane %v1083, 1
    %v1149 = vmul.f32 %v1145, %v1147
    %1151 = vrot.lane.b32.xlu0 %v1145, 64
    %v1152 = vpop.permute.xlu0 %1151
    %v1154 = vmul.f32 %v1145, %v1152
    %1156 = vrot.lane.b32.xlu0 %v1154, 32
    %v1157 = vpop.permute.xlu0 %1156
    %v1159 = vadd.f32 %v1149, %v1157
    %v1160 = vtanh.pop %v1159
    %1162 = vrot.lane.b32.xlu0 %v1160, 64
    %v1163 = vpop.permute.xlu0 %1162
    %v1165 = vmul.f32 %v1145, %v1163
    %1167 = vrot.lane.b32.xlu0 %v1165, 32
    %v1168 = vpop.permute.xlu0 %1167
    %vm1170 = vcmask 257027
    %1171 = vst.msk [vmem:[#allocation13 - $0x1] sm:$0x8] %vm1170, %v1168
    %v1172 = vrot.slane %v1165, 3
    %1173 = vrot.lane.b32.xlu0 %v1172, 32
    %v1174 = vpop.permute.xlu0 %1173
    %v1175 = vsel %vm139, %v1174, 0
    %1177 = vmatpush.msra.mxu0 0.0
    %1178 = vmatpush.msra.mxu0 0.0
    %1179 = vmatpush.msra.mxu0 0.0
    %1180 = vmatpush.msra.mxu0 0.0
    %1181 = vmatpush.msra.mxu0 0.0
    %1182 = vmatpush.msra.mxu0 0.0
    %1183 = vmatpush.msra.mxu0 0.0
    %1184 = vmatpush.msra.mxu0 0.0
    %1185 = vmatpush.msra.mxu0 0.0
    %1186 = vmatpush.msra.mxu0 0.0
    %1187 = vmatpush.msra.mxu0 0.0
    %1188 = vmatpush.msra.mxu0 0.0
    %1189 = vmatpush.msra.mxu0 %v134
    %1190 = vmatpush.msra.mxu0 %v133
    %1191 = vmatpush.msra.mxu0 %v132
    %1192 = vmatpush.msra.mxu0 %v131
    %1193 = vmatmul.f32.gmra.mxu0 %v1175
    %v1194 = vpop.f32.mrf.mxu0
    %v1195 = vadd.f32 0.0, %v1194
    %1196 = vdwg.mxu0
    %v1198 = vrot.slane %v1195, 6
    %v1200 = vadd.f32 %v184, %v1198
    %v1201 = vtanh.pop %v1200
    %v1202 = vxor.u32 %v1200, 2147483648
    %v1203 = vmul.f32 %v1202, 1.442695
    %v1204 = vpow.pop %v1203
    %v1205 = vadd.f32 %v1204, 1.0
    %v1206 = vrcp.pop %v1205
    %v1207 = vmul.f32 %v1205, %v1206
    %v1208 = vsub.f32 1.0, %v1207
    %v1209 = vmul.f32 %v1206, %v1208
    %v1210 = vadd.f32 %v1206, %v1209
    %vm1211 = vweird.f32 %v1205
    %vm1212 = vweird.f32 %v1206
    %vm1213 = vmor %vm1211, %vm1212
    %v1214 = vsel %vm1213, %v1206, %v1210
    %v1215 = vand.u32 2147483647, %v1205
    %vm1216 = vcmp.eq.f32.partialorder %v1215, 8.507059e+37
    %v1217 = vand.u32 %v1205, 2147483648
    %v1218 = vor.u32 1.1754944e-38, %v1217
    %v1219 = vsel %vm1216, %v1218, %v1214
    %v1220 = vmul.f32 1.0, %v1219
    %v1221 = vsel %vm190, %v1201, %v1220
    %v1223 = vrot.slane %v1159, 1
    %v1225 = vmul.f32 %v1221, %v1223
    %1227 = vrot.lane.b32.xlu0 %v1221, 64
    %v1228 = vpop.permute.xlu0 %1227
    %v1230 = vmul.f32 %v1221, %v1228
    %1232 = vrot.lane.b32.xlu0 %v1230, 32
    %v1233 = vpop.permute.xlu0 %1232
    %v1235 = vadd.f32 %v1225, %v1233
    %v1236 = vtanh.pop %v1235
    %1238 = vrot.lane.b32.xlu0 %v1236, 64
    %v1239 = vpop.permute.xlu0 %1238
    %v1241 = vmul.f32 %v1221, %v1239
    %1243 = vrot.lane.b32.xlu0 %v1241, 32
    %v1244 = vpop.permute.xlu0 %1243
    %vm1246 = vcmask 256002
    %1247 = vst.msk [vmem:[#allocation13 - $0x1] sm:$0x4] %vm1246, %v1244
    %v1248 = vrot.slane %v1241, 2
    %1249 = vrot.lane.b32.xlu0 %v1248, 32
    %v1250 = vpop.permute.xlu0 %1249
    %v1251 = vsel %vm139, %v1250, 0
    %1253 = vmatpush.msra.mxu0 0.0
    %1254 = vmatpush.msra.mxu0 0.0
    %1255 = vmatpush.msra.mxu0 0.0
    %1256 = vmatpush.msra.mxu0 0.0
    %1257 = vmatpush.msra.mxu0 0.0
    %1258 = vmatpush.msra.mxu0 0.0
    %1259 = vmatpush.msra.mxu0 0.0
    %1260 = vmatpush.msra.mxu0 0.0
    %1261 = vmatpush.msra.mxu0 0.0
    %1262 = vmatpush.msra.mxu0 0.0
    %1263 = vmatpush.msra.mxu0 0.0
    %1264 = vmatpush.msra.mxu0 0.0
    %1265 = vmatpush.msra.mxu0 %v134
    %1266 = vmatpush.msra.mxu0 %v133
    %1267 = vmatpush.msra.mxu0 %v132
    %1268 = vmatpush.msra.mxu0 %v131
    %1269 = vmatmul.f32.gmra.mxu0 %v1251
    %v1270 = vpop.f32.mrf.mxu0
    %v1271 = vadd.f32 0.0, %v1270
    %1272 = vdwg.mxu0
    %v1274 = vrot.slane %v1271, 7
    %v1276 = vadd.f32 %v184, %v1274
    %v1277 = vtanh.pop %v1276
    %v1278 = vxor.u32 %v1276, 2147483648
    %v1279 = vmul.f32 %v1278, 1.442695
    %v1280 = vpow.pop %v1279
    %v1281 = vadd.f32 %v1280, 1.0
    %v1282 = vrcp.pop %v1281
    %v1283 = vmul.f32 %v1281, %v1282
    %v1284 = vsub.f32 1.0, %v1283
    %v1285 = vmul.f32 %v1282, %v1284
    %v1286 = vadd.f32 %v1282, %v1285
    %vm1287 = vweird.f32 %v1281
    %vm1288 = vweird.f32 %v1282
    %vm1289 = vmor %vm1287, %vm1288
    %v1290 = vsel %vm1289, %v1282, %v1286
    %v1291 = vand.u32 2147483647, %v1281
    %vm1292 = vcmp.eq.f32.partialorder %v1291, 8.507059e+37
    %v1293 = vand.u32 %v1281, 2147483648
    %v1294 = vor.u32 1.1754944e-38, %v1293
    %v1295 = vsel %vm1292, %v1294, %v1290
    %v1296 = vmul.f32 1.0, %v1295
    %v1297 = vsel %vm190, %v1277, %v1296
    %v1299 = vrot.slane %v1235, 1
    %v1301 = vmul.f32 %v1297, %v1299
    %1303 = vrot.lane.b32.xlu0 %v1297, 64
    %v1304 = vpop.permute.xlu0 %1303
    %v1306 = vmul.f32 %v1297, %v1304
    %1308 = vrot.lane.b32.xlu0 %v1306, 32
    %v1309 = vpop.permute.xlu0 %1308
    %v1311 = vadd.f32 %v1301, %v1309
    %v1312 = vtanh.pop %v1311
    %1314 = vrot.lane.b32.xlu0 %v1312, 64
    %v1315 = vpop.permute.xlu0 %1314
    %v1317 = vmul.f32 %v1297, %v1315
    %1319 = vrot.lane.b32.xlu0 %v1317, 32
    %v1320 = vpop.permute.xlu0 %1319
    %vm1322 = vcmask 254977
    %1323 = vst.msk [vmem:[#allocation13 - $0x1] sm:$0x2] %vm1322, %v1320
    // Predicated region
    $region54: #{autoencoder_forward.1} parent=1 // pred_check
      _
    $region55: #{autoencoder_forward.1} parent=1 // pred_check_branch
      %1325 = sbr.rel (0) target = $region57
    $region56: #{autoencoder_forward.1} parent=1 // pred_region
      %1327 = vsyncadd [#allocation4], 0
      %s1329 = sshll.u32 [#allocation13], 4
      %s1330 = int_to_ptr.vmem [resolvable:$true] %s1329
      %s1331 = sshll.u32 %s7, 4
      %s1332 = int_to_ptr.hbm [resolvable:$true] %s1331
      %1334 = dma.vmem_to_hbm [thread:$0]  %s1330, 128, %s1332, [#allocation4]
    $region57: #{autoencoder_forward.1} parent=1 // pred_fallthru
      _
    // Predicated region
    $region58: #{autoencoder_forward.1} parent=1 // pred_check
      _
    $region59: #{autoencoder_forward.1} parent=1 // pred_check_branch
      %1336 = sbr.rel (0) target = $region61
    $region60: #{autoencoder_forward.1} parent=1 // pred_region
      %1338 = dma.done [#allocation4], 128
    $region61: #{autoencoder_forward.1} parent=1 // pred_fallthru
      _
    %1339 = vsyncpa [#allocation3], 1
    %1340 = vsyncpa [#allocation6], 1
    %1341 = vsyncpa [#allocation9], 1
    %1342 = vsyncpa [#allocation12], 1
    %1343 = vsyncpa [#allocation4], 1

</llo_original>
